<compile_context>
chip_gen: v7x
topology: tpu7x:2x2x1
jax: 0.10.0
libtpu: 0.0.40
codegen_flags: <defaults>
</compile_context>

<pallas_src>
import math

import jax
import jax.numpy as jnp
from jax import lax
from jax.experimental import pallas as pl
from jax.experimental.pallas import tpu as pltpu


# -----------------------------------------------------------------------------
# Fused encoder kernel factory.
#   kplan: per block (pooled: bool, H: int, nconv: int)    (static)
#   nb:    images per grid step
#   scratch_idx: per conv (in order), index of its staging scratch ref
# -----------------------------------------------------------------------------
def _make_encoder_kernel(kplan, nb, scratch_idx):
    n_scratch = (max(scratch_idx) + 1) if scratch_idx else 0

    def kernel(*refs):
        # ---- parse refs: x, [pr], (t, b)*nconv per block, out, scratches ----
        i = 0
        x_ref = refs[i]; i += 1
        block_refs = []
        for (pooled, _, nconv) in kplan:
            pr_ref = None
            if pooled:
                pr_ref = refs[i]; i += 1
            convs = tuple((refs[i + 2 * j], refs[i + 2 * j + 1])
                          for j in range(nconv))
            i += 2 * nconv
            block_refs.append((pr_ref, convs))
        out_ref = refs[i]; i += 1
        pad_refs = refs[i:i + n_scratch]

        a = x_ref[...]                                # (nb*H0, W0*C0) f32
        ci = 0
        for (pooled, H, _), (pr_ref, convs) in zip(kplan, block_refs):
            if pooled:
                # Row half of the 2x2 average pool (exact f32, tiny matmul on
                # batch-flattened rows).  Column half is folded into the first
                # conv's Toeplitz weights by the wrapper.
                a = jnp.dot(pr_ref[...], a, preferred_element_type=jnp.float32)

            m = nb * H
            row = lax.broadcasted_iota(jnp.int32, (m, 1), 0) % H
            is_top = row == 0
            is_bot = row == H - 1

            for (t_ref, b_ref) in convs:
                pad = pad_refs[scratch_idx[ci]]; ci += 1
                # +-1 row shifted copies of `a` via a small VMEM staging
                # buffer; image-boundary rows (including the never-written
                # halo rows 0 / m+1 of the buffer) are masked to zero, which
                # is exactly the conv's zero row padding.
                pad[pl.ds(1, m), :] = a
                up = jnp.where(is_top, 0.0, pad[pl.ds(0, m), :])
                dn = jnp.where(is_bot, 0.0, pad[pl.ds(2, m), :])
                # Single K = 3*W*Cin GEMM per conv (im2col over kernel rows);
                # bf16 operands, f32 accumulation.
                lhs = jnp.concatenate([up, a, dn], axis=1).astype(jnp.bfloat16)
                acc = jnp.dot(lhs, t_ref[...],
                              preferred_element_type=jnp.float32)
                a = jnp.maximum(acc + b_ref[...], 0.0)      # bias + ReLU (f32)

        out_ref[...] = a.astype(out_ref.dtype)

    return kernel


# -----------------------------------------------------------------------------
# Wrapper-side (plain JAX, run ONCE outside jit) weight / pool lowering.
# -----------------------------------------------------------------------------
def _conv_toeplitz(w, W):
    """w: (3, 3, Cin, Cout) HWIO -> T: (3, W*Cin, W*Cout) banded weights with
    conv_out_rows[y] = sum_dy padded_rows[y + dy] @ T[dy]   (one zero halo row
    above/below the image; column zero padding folded into T's zero bands)."""
    _, _, cin, cout = w.shape
    xs = jnp.arange(W)
    # sel[dx, x, wo] = 1  iff  x == wo + dx - 1
    sel = (xs[None, :, None] == xs[None, None, :]
           + jnp.arange(3)[:, None, None] - 1).astype(w.dtype)
    t = jnp.einsum('dxw,ydco->yxcwo', sel, w,
                   precision='highest')               # (3, W, Cin, W, Cout)
    return t.reshape(3, W * cin, W * cout)


def _col_pool_matrix(w_in, w_out, c):
    """(W_in*C, W_out*C) matrix averaging adjacent column pairs (pool cols)."""
    colsel = (jnp.arange(w_in)[:, None] // 2 ==
              jnp.arange(w_out)[None, :]).astype(jnp.float32)
    pc = 0.5 * jnp.einsum('vw,cd->vcwd', colsel, jnp.eye(c, dtype=jnp.float32))
    return pc.reshape(w_in * c, w_out * c)


def _row_pool_matrix(m_out):
    """(m_out, 2*m_out) matrix averaging adjacent row pairs.  Valid on
    batch-flattened rows because H_in = 2*H keeps image rows aligned."""
    r = jnp.arange(m_out)
    pr = jnp.zeros((m_out, 2 * m_out), jnp.float32)
    return pr.at[r, 2 * r].set(0.5).at[r, 2 * r + 1].set(0.5)


def _pick_batch_tile(n):
    """Images per grid step: grow GEMM M, but keep grid >= 2 for megacore."""
    for nb in (8, 4, 2):
        if n % nb == 0 and n // nb >= 2:
            return nb
    return 1


def prepare_encoder(params, input_channels, H0, W0, N):
    """One-time lowering of Encoder params to Pallas kernel operands.

    Returns (plan, tensors): `plan` is static Python structure, `tensors` is a
    flat tuple of arrays in the exact order they are fed to the pallas_call.
    """
    nb = _pick_batch_tile(N)

    # Zero-pad the first conv's input channels so W0*C0 is 128-lane aligned
    # whenever the required pad is small (keeps every operand / concat aligned).
    unit = 128 // math.gcd(W0, 128)
    c0p = input_channels if unit > 8 else (-(-input_channels // unit)) * unit

    tensors = []
    blocks_plan = []
    H, W, cin = H0, W0, c0p
    for i, block in enumerate(params):
        pooled = i != 0
        pc = None
        if pooled:
            assert H % 2 == 0 and W % 2 == 0, (
                "TODO(synk): AvgPool2d ceil_mode=True (odd H/W) unsupported")
            H_in, W_in = H, W
            H, W = H // 2, W // 2
            tensors.append(_row_pool_matrix(nb * H))
            pc = _col_pool_matrix(W_in, W, cin)

        conv_plan = []
        for j, (w, b) in enumerate(block):
            cout = w.shape[-1]
            w = w.astype(jnp.float32)
            if i == 0 and j == 0 and c0p != input_channels:
                w = jnp.pad(w, ((0, 0), (0, 0), (0, c0p - input_channels), (0, 0)))
            t = _conv_toeplitz(w, W)                       # (3, W*cin, W*cout)
            if pooled and j == 0:
                # Fold the column half of the 2x2 avg pool into the weights.
                t = jnp.einsum('vk,dkn->dvn', pc, t, precision='highest')
            kb = t.shape[1]                                # band width (K/3)
            tensors.append(t.reshape(3 * kb, W * cout).astype(jnp.bfloat16))
            tensors.append(jnp.tile(b.astype(jnp.float32), W).reshape(1, W * cout))
            conv_plan.append(kb)
            cin = cout
        blocks_plan.append({'pooled': pooled, 'H': H, 'convs': tuple(conv_plan)})

    plan = {'nb': nb, 'c0_pad': c0p, 'blocks': tuple(blocks_plan),
            'H_last': H, 'W_last': W, 'C_last': cin}
    return plan, tuple(tensors)


# -----------------------------------------------------------------------------
# Forward: one fused pallas_call for the whole encoder.
# -----------------------------------------------------------------------------
def encoder_apply(x, tensors, plan):
    """x: (N, H, W, C) NHWC float32 -> (N, H', W', C') float32."""
    N, H0, W0, c0 = x.shape
    nb = plan['nb']
    assert N % nb == 0
    c0p = plan['c0_pad']
    if c0p != c0:
        x = jnp.pad(x, ((0, 0), (0, 0), (0, 0), (0, c0p - c0)))
    xf = x.reshape(N * H0, W0 * c0p)       # lane-flattened NHWC, batch in rows

    inputs = [xf]
    in_specs = [pl.BlockSpec((nb * H0, W0 * c0p), lambda n: (n, 0))]
    scratch_shapes, shape_to_idx, scratch_idx, kplan = [], {}, [], []
    ti = 0
    for binfo in plan['blocks']:
        if binfo['pooled']:
            pr = tensors[ti]; ti += 1
            inputs.append(pr)
            in_specs.append(pl.BlockSpec(pr.shape, lambda n: (0, 0)))
        m = nb * binfo['H']
        for kb in binfo['convs']:
            t, bt = tensors[ti], tensors[ti + 1]; ti += 2
            inputs += [t, bt]
            in_specs += [pl.BlockSpec(t.shape, lambda n: (0, 0)),
                         pl.BlockSpec(bt.shape, lambda n: (0, 0))]
            key = (m + 2, kb)                       # shared across equal shapes
            if key not in shape_to_idx:
                shape_to_idx[key] = len(scratch_shapes)
                scratch_shapes.append(pltpu.VMEM(key, jnp.float32))
            scratch_idx.append(shape_to_idx[key])
        kplan.append((binfo['pooled'], binfo['H'], len(binfo['convs'])))

    H_l, W_l, C_l = plan['H_last'], plan['W_last'], plan['C_last']
    n_last = W_l * C_l                              # lane-dense output width
    out = pl.pallas_call(
        _make_encoder_kernel(tuple(kplan), nb, tuple(scratch_idx)),
        out_shape=jax.ShapeDtypeStruct((N * H_l, n_last), jnp.float32),
        grid_spec=pltpu.PrefetchScalarGridSpec(
            num_scalar_prefetch=0,
            grid=(N // nb,),
            in_specs=in_specs,
            out_specs=pl.BlockSpec((nb * H_l, n_last), lambda n: (n, 0)),
            scratch_shapes=scratch_shapes,
        ),
        compiler_params=pltpu.CompilerParams(
            dimension_semantics=("parallel",)),
    )(*inputs)
    return out.reshape(N, H_l, W_l, C_l)


# -----------------------------------------------------------------------------
# Encoder parameters (mirrors shapes created in Encoder.__init__) and reference.
# -----------------------------------------------------------------------------
def init_encoder_params(key, input_channels, num_filters, no_convs_per_block,
                        posterior=False):
    in_ch = input_channels + (1 if posterior else 0)
    params = []
    cin = in_ch
    for nf in num_filters:
        block = []
        for _ in range(no_convs_per_block):
            key, kw, kb = jax.random.split(key, 3)
            w = jax.random.normal(kw, (3, 3, cin, nf), jnp.float32) * 0.1
            b = jax.random.normal(kb, (nf,), jnp.float32) * 0.01
            # round to bf16-representable values so the bf16 MXU path and the
            # f32 reference consume identical parameters
            w = w.astype(jnp.bfloat16).astype(jnp.float32)
            b = b.astype(jnp.bfloat16).astype(jnp.float32)
            block.append((w, b))
            cin = nf
        params.append(block)
    return params


def _encoder_reference(x, params):
    """Pure-JAX reference of the PyTorch forward (NHWC)."""
    for i, block in enumerate(params):
        if i != 0:
            N, H, W, C = x.shape
            x = x.reshape(N, H // 2, 2, W // 2, 2, C).mean(axis=(2, 4))
        for (w, b) in block:
            y = lax.conv_general_dilated(
                x, w, window_strides=(1, 1), padding="SAME",
                dimension_numbers=("NHWC", "HWIO", "NHWC"))
            x = jnp.maximum(y + b, 0.0)
    return x


if __name__ == "__main__":
    # Config consistent with the module: input_channels=4, num_filters=[8, 16],
    # no_convs_per_block=2, padding=True, posterior=False.
    key = jax.random.PRNGKey(0)
    k_x, k_p = jax.random.split(key)

    input_channels = 4
    num_filters = [8, 16]
    no_convs_per_block = 2

    # NHWC input (equivalent PyTorch NCHW input would be (2, 4, 16, 16)).
    x = jax.random.normal(k_x, (2, 16, 16, input_channels), jnp.float32)
    x = x.astype(jnp.bfloat16).astype(jnp.float32)   # bf16-representable values
    params = init_encoder_params(k_p, input_channels, num_filters,
                                 no_convs_per_block)

    # One-time lowering of weights (Toeplitz / pool-fold), outside the jit.
    plan, tensors = prepare_encoder(params, input_channels,
                                    H0=x.shape[1], W0=x.shape[2], N=x.shape[0])

    fwd = jax.jit(lambda xx, tt: encoder_apply(xx, tt, plan))
    out = jax.block_until_ready(fwd(x, tensors))

    ref = _encoder_reference(x, params)
    assert out.shape == (2, 8, 8, num_filters[-1]), out.shape
    max_err = float(jnp.max(jnp.abs(out - ref)))
    # bf16 matmul operands with f32 accumulation -> small relative error.
    assert jnp.allclose(out, ref, rtol=3e-2, atol=3e-2), max_err

    print("KERNEL_OK")
</pallas_src>

<mosaic_0001>
module attributes {stable_mosaic.version = 11 : i64} {
  func.func @kernel(%arg0: i32, %arg1: memref<16x128xf32, #tpu.memory_space<vmem>>, %arg2: memref<384x128xbf16, #tpu.memory_space<vmem>>, %arg3: memref<1x128xf32, #tpu.memory_space<vmem>>, %arg4: memref<384x128xbf16, #tpu.memory_space<vmem>>, %arg5: memref<1x128xf32, #tpu.memory_space<vmem>>, %arg6: memref<8x16xf32, #tpu.memory_space<vmem>>, %arg7: memref<384x128xbf16, #tpu.memory_space<vmem>>, %arg8: memref<1x128xf32, #tpu.memory_space<vmem>>, %arg9: memref<384x128xbf16, #tpu.memory_space<vmem>>, %arg10: memref<1x128xf32, #tpu.memory_space<vmem>>, %arg11: memref<8x128xf32, #tpu.memory_space<vmem>>, %arg12: memref<18x128xf32, #tpu.memory_space<vmem>>, %arg13: memref<10x128xf32, #tpu.memory_space<vmem>>) attributes {dimension_semantics = [#tpu.dimension_semantics<parallel>], iteration_bounds = array<i64: 2>, scalar_prefetch = 0 : i64, scratch_operands = 2 : i64, tpu.core_type = #tpu.core_type<tc>, window_params = [{transform_indices = @transform_0, window_bounds = array<i64: 16, 128>}, {pipeline_mode = #tpu.pipeline_mode<synchronous>, transform_indices = @transform_1, window_bounds = array<i64: 384, 128>}, {pipeline_mode = #tpu.pipeline_mode<synchronous>, transform_indices = @transform_2, window_bounds = array<i64: 1, 128>}, {pipeline_mode = #tpu.pipeline_mode<synchronous>, transform_indices = @transform_3, window_bounds = array<i64: 384, 128>}, {pipeline_mode = #tpu.pipeline_mode<synchronous>, transform_indices = @transform_4, window_bounds = array<i64: 1, 128>}, {pipeline_mode = #tpu.pipeline_mode<synchronous>, transform_indices = @transform_5, window_bounds = array<i64: 8, 16>}, {pipeline_mode = #tpu.pipeline_mode<synchronous>, transform_indices = @transform_6, window_bounds = array<i64: 384, 128>}, {pipeline_mode = #tpu.pipeline_mode<synchronous>, transform_indices = @transform_7, window_bounds = array<i64: 1, 128>}, {pipeline_mode = #tpu.pipeline_mode<synchronous>, transform_indices = @transform_8, window_bounds = array<i64: 384, 128>}, {pipeline_mode = #tpu.pipeline_mode<synchronous>, transform_indices = @transform_9, window_bounds = array<i64: 1, 128>}, {transform_indices = @transform_10, window_bounds = array<i64: 8, 128>}]} {
    %c0 = arith.constant 0 : index
    %c0_0 = arith.constant 0 : index
    %0 = vector.load %arg1[%c0, %c0_0] : memref<16x128xf32, #tpu.memory_space<vmem>>, vector<16x128xf32>
    %1 = tpu.iota {dimensions = array<i32: 0>} : vector<16x1xi32>
    %c16_i32 = arith.constant 16 : i32
    %c0_i32 = arith.constant 0 : i32
    %2 = arith.cmpi eq, %c16_i32, %c0_i32 : i32
    %c1_i32 = arith.constant 1 : i32
    %3 = arith.select %2, %c1_i32, %c16_i32 : i32
    %4 = vector.broadcast %3 : i32 to vector<16x1xi32>
    %5 = arith.remsi %1, %4 : vector<16x1xi32>
    %c0_i32_1 = arith.constant 0 : i32
    %6 = vector.broadcast %c0_i32_1 : i32 to vector<16x1xi32>
    %7 = arith.cmpi ne, %5, %6 : vector<16x1xi32>
    %c0_i32_2 = arith.constant 0 : i32
    %8 = vector.broadcast %c0_i32_2 : i32 to vector<16x1xi32>
    %9 = arith.cmpi slt, %5, %8 : vector<16x1xi32>
    %c0_i32_3 = arith.constant 0 : i32
    %10 = arith.cmpi slt, %3, %c0_i32_3 : i32
    %11 = vector.broadcast %10 : i1 to vector<16x1xi1>
    %12 = vector.broadcast %11 : vector<16x1xi1> to vector<16x1xi1>
    %13 = arith.xori %9, %12 : vector<16x1xi1>
    %14 = arith.andi %13, %7 : vector<16x1xi1>
    %15 = vector.broadcast %3 : i32 to vector<16x1xi32>
    %16 = arith.addi %5, %15 : vector<16x1xi32>
    %17 = arith.select %14, %16, %5 : vector<16x1xi1>, vector<16x1xi32>
    %c0_i32_4 = arith.constant 0 : i32
    %18 = vector.broadcast %c0_i32_4 : i32 to vector<16x1xi32>
    %19 = arith.cmpi eq, %17, %18 : vector<16x1xi32>
    %c15_i32 = arith.constant 15 : i32
    %20 = vector.broadcast %c15_i32 : i32 to vector<16x1xi32>
    %21 = arith.cmpi eq, %17, %20 : vector<16x1xi32>
    %c1 = arith.constant 1 : index
    %c0_5 = arith.constant 0 : index
    %22 = vector.load %arg12[%c1, %c0_5] : memref<18x128xf32, #tpu.memory_space<vmem>>, vector<16x128xf32>
    tpu.vector_store %arg12[%c1, %c0_5], %0 {strides = array<i32>} : memref<18x128xf32, #tpu.memory_space<vmem>>, vector<16x128xf32>,
    %c0_6 = arith.constant 0 : index
    %c0_7 = arith.constant 0 : index
    %23 = vector.load %arg12[%c0_6, %c0_7] : memref<18x128xf32, #tpu.memory_space<vmem>>, vector<16x128xf32>
    %cst = arith.constant 0.000000e+00 : f32
    %24 = vector.shape_cast %19 : vector<16x1xi1> to vector<16x1xi1>
    %25 = vector.broadcast %24 : vector<16x1xi1> to vector<16x128xi1>
    %26 = vector.broadcast %cst : f32 to vector<16x128xf32>
    %27 = arith.select %25, %26, %23 : vector<16x128xi1>, vector<16x128xf32>
    %c2 = arith.constant 2 : index
    %c0_8 = arith.constant 0 : index
    %28 = vector.load %arg12[%c2, %c0_8] : memref<18x128xf32, #tpu.memory_space<vmem>>, vector<16x128xf32>
    %cst_9 = arith.constant 0.000000e+00 : f32
    %29 = vector.shape_cast %21 : vector<16x1xi1> to vector<16x1xi1>
    %30 = vector.broadcast %29 : vector<16x1xi1> to vector<16x128xi1>
    %31 = vector.broadcast %cst_9 : f32 to vector<16x128xf32>
    %32 = arith.select %30, %31, %28 : vector<16x128xi1>, vector<16x128xf32>
    %33 = tpu.concatenate %27, %0, %32 in 1 : vector<16x128xf32>, vector<16x128xf32>, vector<16x128xf32> -> vector<16x384xf32>
    %34 = arith.truncf %33 : vector<16x384xf32> to vector<16x384xbf16>
    %c0_10 = arith.constant 0 : index
    %c0_11 = arith.constant 0 : index
    %35 = vector.load %arg2[%c0_10, %c0_11] : memref<384x128xbf16, #tpu.memory_space<vmem>>, vector<384x128xbf16>
    %cst_12 = arith.constant dense<0.000000e+00> : vector<16x128xf32>
    %36 = tpu.matmul %34, %35, %cst_12 {dimension_numbers = #tpu.dot_dimension_numbers<[1], [0], [0], [1], [0, 0, 1, 1], [], []>} : vector<16x384xbf16>, vector<384x128xbf16>, vector<16x128xf32> -> vector<16x128xf32>
    %c0_13 = arith.constant 0 : index
    %c0_14 = arith.constant 0 : index
    %37 = vector.load %arg3[%c0_13, %c0_14] : memref<1x128xf32, #tpu.memory_space<vmem>>, vector<1x128xf32>
    %38 = vector.broadcast %37 : vector<1x128xf32> to vector<16x128xf32>
    %39 = arith.addf %36, %38 : vector<16x128xf32>
    %cst_15 = arith.constant 0.000000e+00 : f32
    %40 = vector.broadcast %cst_15 : f32 to vector<16x128xf32>
    %41 = arith.maximumf %39, %40 : vector<16x128xf32>
    %c1_16 = arith.constant 1 : index
    %c0_17 = arith.constant 0 : index
    %42 = vector.load %arg12[%c1_16, %c0_17] : memref<18x128xf32, #tpu.memory_space<vmem>>, vector<16x128xf32>
    tpu.vector_store %arg12[%c1_16, %c0_17], %41 {strides = array<i32>} : memref<18x128xf32, #tpu.memory_space<vmem>>, vector<16x128xf32>,
    %c0_18 = arith.constant 0 : index
    %c0_19 = arith.constant 0 : index
    %43 = vector.load %arg12[%c0_18, %c0_19] : memref<18x128xf32, #tpu.memory_space<vmem>>, vector<16x128xf32>
    %cst_20 = arith.constant 0.000000e+00 : f32
    %44 = vector.shape_cast %19 : vector<16x1xi1> to vector<16x1xi1>
    %45 = vector.broadcast %44 : vector<16x1xi1> to vector<16x128xi1>
    %46 = vector.broadcast %cst_20 : f32 to vector<16x128xf32>
    %47 = arith.select %45, %46, %43 : vector<16x128xi1>, vector<16x128xf32>
    %c2_21 = arith.constant 2 : index
    %c0_22 = arith.constant 0 : index
    %48 = vector.load %arg12[%c2_21, %c0_22] : memref<18x128xf32, #tpu.memory_space<vmem>>, vector<16x128xf32>
    %cst_23 = arith.constant 0.000000e+00 : f32
    %49 = vector.shape_cast %21 : vector<16x1xi1> to vector<16x1xi1>
    %50 = vector.broadcast %49 : vector<16x1xi1> to vector<16x128xi1>
    %51 = vector.broadcast %cst_23 : f32 to vector<16x128xf32>
    %52 = arith.select %50, %51, %48 : vector<16x128xi1>, vector<16x128xf32>
    %53 = tpu.concatenate %47, %41, %52 in 1 : vector<16x128xf32>, vector<16x128xf32>, vector<16x128xf32> -> vector<16x384xf32>
    %54 = arith.truncf %53 : vector<16x384xf32> to vector<16x384xbf16>
    %c0_24 = arith.constant 0 : index
    %c0_25 = arith.constant 0 : index
    %55 = vector.load %arg4[%c0_24, %c0_25] : memref<384x128xbf16, #tpu.memory_space<vmem>>, vector<384x128xbf16>
    %cst_26 = arith.constant dense<0.000000e+00> : vector<16x128xf32>
    %56 = tpu.matmul %54, %55, %cst_26 {dimension_numbers = #tpu.dot_dimension_numbers<[1], [0], [0], [1], [0, 0, 1, 1], [], []>} : vector<16x384xbf16>, vector<384x128xbf16>, vector<16x128xf32> -> vector<16x128xf32>
    %c0_27 = arith.constant 0 : index
    %c0_28 = arith.constant 0 : index
    %57 = vector.load %arg5[%c0_27, %c0_28] : memref<1x128xf32, #tpu.memory_space<vmem>>, vector<1x128xf32>
    %58 = vector.broadcast %57 : vector<1x128xf32> to vector<16x128xf32>
    %59 = arith.addf %56, %58 : vector<16x128xf32>
    %cst_29 = arith.constant 0.000000e+00 : f32
    %60 = vector.broadcast %cst_29 : f32 to vector<16x128xf32>
    %61 = arith.maximumf %59, %60 : vector<16x128xf32>
    %c0_30 = arith.constant 0 : index
    %c0_31 = arith.constant 0 : index
    %62 = vector.load %arg6[%c0_30, %c0_31] : memref<8x16xf32, #tpu.memory_space<vmem>>, vector<8x16xf32>
    %cst_32 = arith.constant dense<0.000000e+00> : vector<8x128xf32>
    %63 = tpu.matmul %62, %61, %cst_32 {dimension_numbers = #tpu.dot_dimension_numbers<[1], [0], [0], [1], [0, 0, 1, 1], [], []>} : vector<8x16xf32>, vector<16x128xf32>, vector<8x128xf32> -> vector<8x128xf32>
    %64 = tpu.iota {dimensions = array<i32: 0>} : vector<8x1xi32>
    %c8_i32 = arith.constant 8 : i32
    %c0_i32_33 = arith.constant 0 : i32
    %65 = arith.cmpi eq, %c8_i32, %c0_i32_33 : i32
    %c1_i32_34 = arith.constant 1 : i32
    %66 = arith.select %65, %c1_i32_34, %c8_i32 : i32
    %67 = vector.broadcast %66 : i32 to vector<8x1xi32>
    %68 = arith.remsi %64, %67 : vector<8x1xi32>
    %c0_i32_35 = arith.constant 0 : i32
    %69 = vector.broadcast %c0_i32_35 : i32 to vector<8x1xi32>
    %70 = arith.cmpi ne, %68, %69 : vector<8x1xi32>
    %c0_i32_36 = arith.constant 0 : i32
    %71 = vector.broadcast %c0_i32_36 : i32 to vector<8x1xi32>
    %72 = arith.cmpi slt, %68, %71 : vector<8x1xi32>
    %c0_i32_37 = arith.constant 0 : i32
    %73 = arith.cmpi slt, %66, %c0_i32_37 : i32
    %74 = vector.broadcast %73 : i1 to vector<8x1xi1>
    %75 = vector.broadcast %74 : vector<8x1xi1> to vector<8x1xi1>
    %76 = arith.xori %72, %75 : vector<8x1xi1>
    %77 = arith.andi %76, %70 : vector<8x1xi1>
    %78 = vector.broadcast %66 : i32 to vector<8x1xi32>
    %79 = arith.addi %68, %78 : vector<8x1xi32>
    %80 = arith.select %77, %79, %68 : vector<8x1xi1>, vector<8x1xi32>
    %c0_i32_38 = arith.constant 0 : i32
    %81 = vector.broadcast %c0_i32_38 : i32 to vector<8x1xi32>
    %82 = arith.cmpi eq, %80, %81 : vector<8x1xi32>
    %c7_i32 = arith.constant 7 : i32
    %83 = vector.broadcast %c7_i32 : i32 to vector<8x1xi32>
    %84 = arith.cmpi eq, %80, %83 : vector<8x1xi32>
    %c1_39 = arith.constant 1 : index
    %c0_40 = arith.constant 0 : index
    %85 = vector.load %arg13[%c1_39, %c0_40] : memref<10x128xf32, #tpu.memory_space<vmem>>, vector<8x128xf32>
    tpu.vector_store %arg13[%c1_39, %c0_40], %63 {strides = array<i32>} : memref<10x128xf32, #tpu.memory_space<vmem>>, vector<8x128xf32>,
    %c0_41 = arith.constant 0 : index
    %c0_42 = arith.constant 0 : index
    %86 = vector.load %arg13[%c0_41, %c0_42] : memref<10x128xf32, #tpu.memory_space<vmem>>, vector<8x128xf32>
    %cst_43 = arith.constant 0.000000e+00 : f32
    %87 = vector.shape_cast %82 : vector<8x1xi1> to vector<8x1xi1>
    %88 = vector.broadcast %87 : vector<8x1xi1> to vector<8x128xi1>
    %89 = vector.broadcast %cst_43 : f32 to vector<8x128xf32>
    %90 = arith.select %88, %89, %86 : vector<8x128xi1>, vector<8x128xf32>
    %c2_44 = arith.constant 2 : index
    %c0_45 = arith.constant 0 : index
    %91 = vector.load %arg13[%c2_44, %c0_45] : memref<10x128xf32, #tpu.memory_space<vmem>>, vector<8x128xf32>
    %cst_46 = arith.constant 0.000000e+00 : f32
    %92 = vector.shape_cast %84 : vector<8x1xi1> to vector<8x1xi1>
    %93 = vector.broadcast %92 : vector<8x1xi1> to vector<8x128xi1>
    %94 = vector.broadcast %cst_46 : f32 to vector<8x128xf32>
    %95 = arith.select %93, %94, %91 : vector<8x128xi1>, vector<8x128xf32>
    %96 = tpu.concatenate %90, %63, %95 in 1 : vector<8x128xf32>, vector<8x128xf32>, vector<8x128xf32> -> vector<8x384xf32>
    %97 = arith.truncf %96 : vector<8x384xf32> to vector<8x384xbf16>
    %c0_47 = arith.constant 0 : index
    %c0_48 = arith.constant 0 : index
    %98 = vector.load %arg7[%c0_47, %c0_48] : memref<384x128xbf16, #tpu.memory_space<vmem>>, vector<384x128xbf16>
    %cst_49 = arith.constant dense<0.000000e+00> : vector<8x128xf32>
    %99 = tpu.matmul %97, %98, %cst_49 {dimension_numbers = #tpu.dot_dimension_numbers<[1], [0], [0], [1], [0, 0, 1, 1], [], []>} : vector<8x384xbf16>, vector<384x128xbf16>, vector<8x128xf32> -> vector<8x128xf32>
    %c0_50 = arith.constant 0 : index
    %c0_51 = arith.constant 0 : index
    %100 = vector.load %arg8[%c0_50, %c0_51] : memref<1x128xf32, #tpu.memory_space<vmem>>, vector<1x128xf32>
    %101 = vector.broadcast %100 : vector<1x128xf32> to vector<8x128xf32>
    %102 = arith.addf %99, %101 : vector<8x128xf32>
    %cst_52 = arith.constant 0.000000e+00 : f32
    %103 = vector.broadcast %cst_52 : f32 to vector<8x128xf32>
    %104 = arith.maximumf %102, %103 : vector<8x128xf32>
    %c1_53 = arith.constant 1 : index
    %c0_54 = arith.constant 0 : index
    %105 = vector.load %arg13[%c1_53, %c0_54] : memref<10x128xf32, #tpu.memory_space<vmem>>, vector<8x128xf32>
    tpu.vector_store %arg13[%c1_53, %c0_54], %104 {strides = array<i32>} : memref<10x128xf32, #tpu.memory_space<vmem>>, vector<8x128xf32>,
    %c0_55 = arith.constant 0 : index
    %c0_56 = arith.constant 0 : index
    %106 = vector.load %arg13[%c0_55, %c0_56] : memref<10x128xf32, #tpu.memory_space<vmem>>, vector<8x128xf32>
    %cst_57 = arith.constant 0.000000e+00 : f32
    %107 = vector.shape_cast %82 : vector<8x1xi1> to vector<8x1xi1>
    %108 = vector.broadcast %107 : vector<8x1xi1> to vector<8x128xi1>
    %109 = vector.broadcast %cst_57 : f32 to vector<8x128xf32>
    %110 = arith.select %108, %109, %106 : vector<8x128xi1>, vector<8x128xf32>
    %c2_58 = arith.constant 2 : index
    %c0_59 = arith.constant 0 : index
    %111 = vector.load %arg13[%c2_58, %c0_59] : memref<10x128xf32, #tpu.memory_space<vmem>>, vector<8x128xf32>
    %cst_60 = arith.constant 0.000000e+00 : f32
    %112 = vector.shape_cast %84 : vector<8x1xi1> to vector<8x1xi1>
    %113 = vector.broadcast %112 : vector<8x1xi1> to vector<8x128xi1>
    %114 = vector.broadcast %cst_60 : f32 to vector<8x128xf32>
    %115 = arith.select %113, %114, %111 : vector<8x128xi1>, vector<8x128xf32>
    %116 = tpu.concatenate %110, %104, %115 in 1 : vector<8x128xf32>, vector<8x128xf32>, vector<8x128xf32> -> vector<8x384xf32>
    %117 = arith.truncf %116 : vector<8x384xf32> to vector<8x384xbf16>
    %c0_61 = arith.constant 0 : index
    %c0_62 = arith.constant 0 : index
    %118 = vector.load %arg9[%c0_61, %c0_62] : memref<384x128xbf16, #tpu.memory_space<vmem>>, vector<384x128xbf16>
    %cst_63 = arith.constant dense<0.000000e+00> : vector<8x128xf32>
    %119 = tpu.matmul %117, %118, %cst_63 {dimension_numbers = #tpu.dot_dimension_numbers<[1], [0], [0], [1], [0, 0, 1, 1], [], []>} : vector<8x384xbf16>, vector<384x128xbf16>, vector<8x128xf32> -> vector<8x128xf32>
    %c0_64 = arith.constant 0 : index
    %c0_65 = arith.constant 0 : index
    %120 = vector.load %arg10[%c0_64, %c0_65] : memref<1x128xf32, #tpu.memory_space<vmem>>, vector<1x128xf32>
    %121 = vector.broadcast %120 : vector<1x128xf32> to vector<8x128xf32>
    %122 = arith.addf %119, %121 : vector<8x128xf32>
    %cst_66 = arith.constant 0.000000e+00 : f32
    %123 = vector.broadcast %cst_66 : f32 to vector<8x128xf32>
    %124 = arith.maximumf %122, %123 : vector<8x128xf32>
    %c0_67 = arith.constant 0 : index
    %c0_68 = arith.constant 0 : index
    %125 = vector.load %arg11[%c0_67, %c0_68] : memref<8x128xf32, #tpu.memory_space<vmem>>, vector<8x128xf32>
    tpu.vector_store %arg11[%c0_67, %c0_68], %124 {strides = array<i32>} : memref<8x128xf32, #tpu.memory_space<vmem>>, vector<8x128xf32>,
    return
  }
  func.func @transform_0(%arg0: i32) -> (i32, i32) {
    %c0_i32 = arith.constant 0 : i32
    %c0_i32_0 = arith.constant 0 : i32
    return %arg0, %c0_i32 : i32, i32
  }
  func.func @transform_1(%arg0: i32) -> (i32, i32) {
    %c0_i32 = arith.constant 0 : i32
    %c0_i32_0 = arith.constant 0 : i32
    %c0_i32_1 = arith.constant 0 : i32
    return %c0_i32, %c0_i32_0 : i32, i32
  }
  func.func @transform_2(%arg0: i32) -> (i32, i32) {
    %c0_i32 = arith.constant 0 : i32
    %c0_i32_0 = arith.constant 0 : i32
    %c0_i32_1 = arith.constant 0 : i32
    return %c0_i32, %c0_i32_0 : i32, i32
  }
  func.func @transform_3(%arg0: i32) -> (i32, i32) {
    %c0_i32 = arith.constant 0 : i32
    %c0_i32_0 = arith.constant 0 : i32
    %c0_i32_1 = arith.constant 0 : i32
    return %c0_i32, %c0_i32_0 : i32, i32
  }
  func.func @transform_4(%arg0: i32) -> (i32, i32) {
    %c0_i32 = arith.constant 0 : i32
    %c0_i32_0 = arith.constant 0 : i32
    %c0_i32_1 = arith.constant 0 : i32
    return %c0_i32, %c0_i32_0 : i32, i32
  }
  func.func @transform_5(%arg0: i32) -> (i32, i32) {
    %c0_i32 = arith.constant 0 : i32
    %c0_i32_0 = arith.constant 0 : i32
    %c0_i32_1 = arith.constant 0 : i32
    return %c0_i32, %c0_i32_0 : i32, i32
  }
  func.func @transform_6(%arg0: i32) -> (i32, i32) {
    %c0_i32 = arith.constant 0 : i32
    %c0_i32_0 = arith.constant 0 : i32
    %c0_i32_1 = arith.constant 0 : i32
    return %c0_i32, %c0_i32_0 : i32, i32
  }
  func.func @transform_7(%arg0: i32) -> (i32, i32) {
    %c0_i32 = arith.constant 0 : i32
    %c0_i32_0 = arith.constant 0 : i32
    %c0_i32_1 = arith.constant 0 : i32
    return %c0_i32, %c0_i32_0 : i32, i32
  }
  func.func @transform_8(%arg0: i32) -> (i32, i32) {
    %c0_i32 = arith.constant 0 : i32
    %c0_i32_0 = arith.constant 0 : i32
    %c0_i32_1 = arith.constant 0 : i32
    return %c0_i32, %c0_i32_0 : i32, i32
  }
  func.func @transform_9(%arg0: i32) -> (i32, i32) {
    %c0_i32 = arith.constant 0 : i32
    %c0_i32_0 = arith.constant 0 : i32
    %c0_i32_1 = arith.constant 0 : i32
    return %c0_i32, %c0_i32_0 : i32, i32
  }
  func.func @transform_10(%arg0: i32) -> (i32, i32) {
    %c0_i32 = arith.constant 0 : i32
    %c0_i32_0 = arith.constant 0 : i32
    return %arg0, %c0_i32 : i32, i32
  }
}

</mosaic_0001>

<llo_original>
// kernel: _lambda_.1
$region0: #{_lambda_.1}
  #allocation0 [shape = 'u32[]', space=smem, size = 0x4, offset = 0x4, fixed_abs, tag = 'smem constant byte address 0x4 - core index']
  #allocation1 [shape = 'u32[144,128]{1,0:T(1,128)}', space=vmem, size = 0x12000, scoped, tag = 'internal scratch']
  #allocation2 [shape = 'f32[18,128]{1,0:T(8,128)}', space=vmem, size = 0x3000, scoped, tag = 'scratch operand']
  #allocation3 [shape = 'f32[10,128]{1,0:T(8,128)}', space=vmem, size = 0x2000, scoped, tag = 'scratch operand']
  %s0 = inlined_call_operand.vmem [shape: f32[32,128], index: 0, kind: input, shape index: {}]
  %s1 = inlined_call_operand.vmem [shape: bf16[384,128], index: 1, kind: input, shape index: {}]
  %s2 = inlined_call_operand.vmem [shape: f32[1,128], index: 2, kind: input, shape index: {}]
  %s3 = inlined_call_operand.vmem [shape: bf16[384,128], index: 3, kind: input, shape index: {}]
  %s4 = inlined_call_operand.vmem [shape: f32[1,128], index: 4, kind: input, shape index: {}]
  %s5 = inlined_call_operand.vmem [shape: f32[8,16], index: 5, kind: input, shape index: {}]
  %s6 = inlined_call_operand.vmem [shape: bf16[384,128], index: 6, kind: input, shape index: {}]
  %s7 = inlined_call_operand.vmem [shape: f32[1,128], index: 7, kind: input, shape index: {}]
  %s8 = inlined_call_operand.vmem [shape: bf16[384,128], index: 8, kind: input, shape index: {}]
  %s9 = inlined_call_operand.vmem [shape: f32[1,128], index: 9, kind: input, shape index: {}]
  %s10 = inlined_call_operand.vmem [shape: f32[16,128], index: 10, kind: output, shape index: {}]
  %s11 = sld [smem:[#allocation0]]
  $region73: #{_lambda_.1} parent=0
    _
  %s13 = ssub.s32 1, %s11
  %s14 = scalar_select 0, %s13, %s11
  loop: start=0, step=1, limit=4
  $region2: #{_lambda_.1} parent=0 // loop_pre_header
    _
  $region3: #{_lambda_.1} parent=0 // loop_header
    %s16 = sphi 0, %s20
    %p17 = scmp.ge.s32.totalorder %s16, 4
    %s26 = sphi 0, %s28
    %s29 = sphi 0, %s26
    %s30 = sphi 0, %s29
    %s46 = sphi 0, %s30
    %s50 = sphi 0, %s50
    %s52 = sphi 0, %s50
    %s53 = sphi 0, %s52
    %s67 = sphi 0, %s53
    %s71 = sphi 0, %s71
    %s73 = sphi 0, %s71
    %s74 = sphi 0, %s73
    %s88 = sphi 0, %s74
    %s92 = sphi 0, %s92
    %s94 = sphi 0, %s92
    %s95 = sphi 0, %s94
    %s109 = sphi 0, %s95
    %s113 = sphi 0, %s113
    %s115 = sphi 0, %s113
    %s116 = sphi 0, %s115
    %s130 = sphi 0, %s116
    %s134 = sphi 0, %s134
    %s136 = sphi 0, %s134
    %s137 = sphi 0, %s136
    %s151 = sphi 0, %s137
    %s155 = sphi 0, %s155
    %s157 = sphi 0, %s155
    %s158 = sphi 0, %s157
    %s172 = sphi 0, %s158
    %s176 = sphi 0, %s176
    %s178 = sphi 0, %s176
    %s179 = sphi 0, %s178
    %s193 = sphi 0, %s179
    %s197 = sphi 0, %s197
    %s199 = sphi 0, %s197
    %s200 = sphi 0, %s199
    %s214 = sphi 0, %s200
    %s218 = sphi 0, %s218
    %s220 = sphi 0, %s218
    %s221 = sphi 0, %s220
    %s235 = sphi 0, %s221
    %s241 = sphi 0, %s243
    %s244 = sphi 0, %s241
    %s245 = sphi 0, %s244
    %s261 = sphi 0, %s245
  $region4: #{_lambda_.1} parent=0 // loop_header_branch
    %19 = sbr.rel (%p17) target = $region8
  $region5: #{_lambda_.1} parent=0 // loop_body
    %s21 = ssub.s32 %s16, 1
    %s22 = ssub.s32 %s16, 2
    %s23 = sadd.s32 %s16, 1
    %s24 = ssub.s32 %s16, %s23
    %p25 = scmp.eq.s32.totalorder %s24, 0
    %s27 = sadd.s32 %s26, 1
    %s28 = scalar_select %p25, %s26, %s27
    %p31 = pneg %p25
    %p32 = scmp.eq.s32.totalorder %s16, 1
    %p33 = por %p31, %p32
    %p34 = scmp.ne.s32.totalorder %s26, %s29
    %p35 = scmp.eq.s32.totalorder %s16, 0
    %p36 = por %p34, %p35
    %p37 = scmp.ne.s32.totalorder %s26, %s29
    %p38 = scmp.eq.s32.totalorder %s21, 1
    %p39 = por %p37, %p38
    %p40 = scmp.ne.s32.totalorder %s29, %s30
    %p41 = scmp.eq.s32.totalorder %s21, 0
    %p42 = por %p40, %p41
    %p43 = scmp.ne.s32.totalorder %s29, %s30
    %p44 = scmp.eq.s32.totalorder %s22, 1
    %p45 = por %p43, %p44
    %p47 = scmp.ne.s32.totalorder %s30, %s46
    %p48 = scmp.eq.s32.totalorder %s22, 0
    %p49 = por %p47, %p48
    %s51 = sadd.s32 %s50, 1
    %p54 = scmp.eq.s32.totalorder %s16, 1
    %p55 = scmp.ne.s32.totalorder %s50, %s52
    %p56 = scmp.eq.s32.totalorder %s16, 0
    %p57 = por %p55, %p56
    %p58 = scmp.ne.s32.totalorder %s50, %s52
    %p59 = scmp.eq.s32.totalorder %s21, 1
    %p60 = por %p58, %p59
    %p61 = scmp.ne.s32.totalorder %s52, %s53
    %p62 = scmp.eq.s32.totalorder %s21, 0
    %p63 = por %p61, %p62
    %p64 = scmp.ne.s32.totalorder %s52, %s53
    %p65 = scmp.eq.s32.totalorder %s22, 1
    %p66 = por %p64, %p65
    %p68 = scmp.ne.s32.totalorder %s53, %s67
    %p69 = scmp.eq.s32.totalorder %s22, 0
    %p70 = por %p68, %p69
    %s72 = sadd.s32 %s71, 1
    %p75 = scmp.eq.s32.totalorder %s16, 1
    %p76 = scmp.ne.s32.totalorder %s71, %s73
    %p77 = scmp.eq.s32.totalorder %s16, 0
    %p78 = por %p76, %p77
    %p79 = scmp.ne.s32.totalorder %s71, %s73
    %p80 = scmp.eq.s32.totalorder %s21, 1
    %p81 = por %p79, %p80
    %p82 = scmp.ne.s32.totalorder %s73, %s74
    %p83 = scmp.eq.s32.totalorder %s21, 0
    %p84 = por %p82, %p83
    %p85 = scmp.ne.s32.totalorder %s73, %s74
    %p86 = scmp.eq.s32.totalorder %s22, 1
    %p87 = por %p85, %p86
    %p89 = scmp.ne.s32.totalorder %s74, %s88
    %p90 = scmp.eq.s32.totalorder %s22, 0
    %p91 = por %p89, %p90
    %s93 = sadd.s32 %s92, 1
    %p96 = scmp.eq.s32.totalorder %s16, 1
    %p97 = scmp.ne.s32.totalorder %s92, %s94
    %p98 = scmp.eq.s32.totalorder %s16, 0
    %p99 = por %p97, %p98
    %p100 = scmp.ne.s32.totalorder %s92, %s94
    %p101 = scmp.eq.s32.totalorder %s21, 1
    %p102 = por %p100, %p101
    %p103 = scmp.ne.s32.totalorder %s94, %s95
    %p104 = scmp.eq.s32.totalorder %s21, 0
    %p105 = por %p103, %p104
    %p106 = scmp.ne.s32.totalorder %s94, %s95
    %p107 = scmp.eq.s32.totalorder %s22, 1
    %p108 = por %p106, %p107
    %p110 = scmp.ne.s32.totalorder %s95, %s109
    %p111 = scmp.eq.s32.totalorder %s22, 0
    %p112 = por %p110, %p111
    %s114 = sadd.s32 %s113, 1
    %p117 = scmp.eq.s32.totalorder %s16, 1
    %p118 = scmp.ne.s32.totalorder %s113, %s115
    %p119 = scmp.eq.s32.totalorder %s16, 0
    %p120 = por %p118, %p119
    %p121 = scmp.ne.s32.totalorder %s113, %s115
    %p122 = scmp.eq.s32.totalorder %s21, 1
    %p123 = por %p121, %p122
    %p124 = scmp.ne.s32.totalorder %s115, %s116
    %p125 = scmp.eq.s32.totalorder %s21, 0
    %p126 = por %p124, %p125
    %p127 = scmp.ne.s32.totalorder %s115, %s116
    %p128 = scmp.eq.s32.totalorder %s22, 1
    %p129 = por %p127, %p128
    %p131 = scmp.ne.s32.totalorder %s116, %s130
    %p132 = scmp.eq.s32.totalorder %s22, 0
    %p133 = por %p131, %p132
    %s135 = sadd.s32 %s134, 1
    %p138 = scmp.eq.s32.totalorder %s16, 1
    %p139 = scmp.ne.s32.totalorder %s134, %s136
    %p140 = scmp.eq.s32.totalorder %s16, 0
    %p141 = por %p139, %p140
    %p142 = scmp.ne.s32.totalorder %s134, %s136
    %p143 = scmp.eq.s32.totalorder %s21, 1
    %p144 = por %p142, %p143
    %p145 = scmp.ne.s32.totalorder %s136, %s137
    %p146 = scmp.eq.s32.totalorder %s21, 0
    %p147 = por %p145, %p146
    %p148 = scmp.ne.s32.totalorder %s136, %s137
    %p149 = scmp.eq.s32.totalorder %s22, 1
    %p150 = por %p148, %p149
    %p152 = scmp.ne.s32.totalorder %s137, %s151
    %p153 = scmp.eq.s32.totalorder %s22, 0
    %p154 = por %p152, %p153
    %s156 = sadd.s32 %s155, 1
    %p159 = scmp.eq.s32.totalorder %s16, 1
    %p160 = scmp.ne.s32.totalorder %s155, %s157
    %p161 = scmp.eq.s32.totalorder %s16, 0
    %p162 = por %p160, %p161
    %p163 = scmp.ne.s32.totalorder %s155, %s157
    %p164 = scmp.eq.s32.totalorder %s21, 1
    %p165 = por %p163, %p164
    %p166 = scmp.ne.s32.totalorder %s157, %s158
    %p167 = scmp.eq.s32.totalorder %s21, 0
    %p168 = por %p166, %p167
    %p169 = scmp.ne.s32.totalorder %s157, %s158
    %p170 = scmp.eq.s32.totalorder %s22, 1
    %p171 = por %p169, %p170
    %p173 = scmp.ne.s32.totalorder %s158, %s172
    %p174 = scmp.eq.s32.totalorder %s22, 0
    %p175 = por %p173, %p174
    %s177 = sadd.s32 %s176, 1
    %p180 = scmp.eq.s32.totalorder %s16, 1
    %p181 = scmp.ne.s32.totalorder %s176, %s178
    %p182 = scmp.eq.s32.totalorder %s16, 0
    %p183 = por %p181, %p182
    %p184 = scmp.ne.s32.totalorder %s176, %s178
    %p185 = scmp.eq.s32.totalorder %s21, 1
    %p186 = por %p184, %p185
    %p187 = scmp.ne.s32.totalorder %s178, %s179
    %p188 = scmp.eq.s32.totalorder %s21, 0
    %p189 = por %p187, %p188
    %p190 = scmp.ne.s32.totalorder %s178, %s179
    %p191 = scmp.eq.s32.totalorder %s22, 1
    %p192 = por %p190, %p191
    %p194 = scmp.ne.s32.totalorder %s179, %s193
    %p195 = scmp.eq.s32.totalorder %s22, 0
    %p196 = por %p194, %p195
    %s198 = sadd.s32 %s197, 1
    %p201 = scmp.eq.s32.totalorder %s16, 1
    %p202 = scmp.ne.s32.totalorder %s197, %s199
    %p203 = scmp.eq.s32.totalorder %s16, 0
    %p204 = por %p202, %p203
    %p205 = scmp.ne.s32.totalorder %s197, %s199
    %p206 = scmp.eq.s32.totalorder %s21, 1
    %p207 = por %p205, %p206
    %p208 = scmp.ne.s32.totalorder %s199, %s200
    %p209 = scmp.eq.s32.totalorder %s21, 0
    %p210 = por %p208, %p209
    %p211 = scmp.ne.s32.totalorder %s199, %s200
    %p212 = scmp.eq.s32.totalorder %s22, 1
    %p213 = por %p211, %p212
    %p215 = scmp.ne.s32.totalorder %s200, %s214
    %p216 = scmp.eq.s32.totalorder %s22, 0
    %p217 = por %p215, %p216
    %s219 = sadd.s32 %s218, 1
    %p222 = scmp.eq.s32.totalorder %s16, 1
    %p223 = scmp.ne.s32.totalorder %s218, %s220
    %p224 = scmp.eq.s32.totalorder %s16, 0
    %p225 = por %p223, %p224
    %p226 = scmp.ne.s32.totalorder %s218, %s220
    %p227 = scmp.eq.s32.totalorder %s21, 1
    %p228 = por %p226, %p227
    %p229 = scmp.ne.s32.totalorder %s220, %s221
    %p230 = scmp.eq.s32.totalorder %s21, 0
    %p231 = por %p229, %p230
    %p232 = scmp.ne.s32.totalorder %s220, %s221
    %p233 = scmp.eq.s32.totalorder %s22, 1
    %p234 = por %p232, %p233
    %p236 = scmp.ne.s32.totalorder %s221, %s235
    %p237 = scmp.eq.s32.totalorder %s22, 0
    %p238 = por %p236, %p237
    %s239 = ssub.s32 %s16, %s23
    %p240 = scmp.eq.s32.totalorder %s239, 0
    %s242 = sadd.s32 %s241, 1
    %s243 = scalar_select %p240, %s241, %s242
    %p246 = pneg %p240
    %p247 = scmp.eq.s32.totalorder %s16, 1
    %p248 = por %p246, %p247
    %p249 = scmp.ne.s32.totalorder %s241, %s244
    %p250 = scmp.eq.s32.totalorder %s16, 0
    %p251 = por %p249, %p250
    %p252 = scmp.ne.s32.totalorder %s241, %s244
    %p253 = scmp.eq.s32.totalorder %s21, 1
    %p254 = por %p252, %p253
    %p255 = scmp.ne.s32.totalorder %s244, %s245
    %p256 = scmp.eq.s32.totalorder %s21, 0
    %p257 = por %p255, %p256
    %p258 = scmp.ne.s32.totalorder %s244, %s245
    %p259 = scmp.eq.s32.totalorder %s22, 1
    %p260 = por %p258, %p259
    %p262 = scmp.ne.s32.totalorder %s245, %s261
    %p263 = scmp.eq.s32.totalorder %s22, 0
    %p264 = por %p262, %p263
    %p265 = scmp.le.s32.totalorder 1, %s16
    %p266 = scmp.lt.s32.totalorder %s16, 3
    %p267 = pnand %p265, %p266
    %p268 = pneg %p267
    // Predicated region
    $region9: #{_lambda_.1} parent=5 // pred_check
      _
    $region10: #{_lambda_.1} parent=5 // pred_check_branch
      %270 = sbr.rel (%p267) target = $region12
    $region11: #{_lambda_.1} parent=5 // pred_region
      %s271 = ssub.s32 %s16, 1
      // Predicated region
      $region13: #{_lambda_.1} parent=11 // pred_check
        %p272 = pneg %p63
      $region14: #{_lambda_.1} parent=11 // pred_check_branch
        %274 = sbr.rel (%p272) target = $region16
      $region15: #{_lambda_.1} parent=11 // pred_region
        _
      $region16: #{_lambda_.1} parent=11 // pred_fallthru
        _
      // Predicated region
      $region17: #{_lambda_.1} parent=11 // pred_check
        %p275 = pneg %p84
      $region18: #{_lambda_.1} parent=11 // pred_check_branch
        %277 = sbr.rel (%p275) target = $region20
      $region19: #{_lambda_.1} parent=11 // pred_region
        _
      $region20: #{_lambda_.1} parent=11 // pred_fallthru
        _
      // Predicated region
      $region21: #{_lambda_.1} parent=11 // pred_check
        %p278 = pneg %p105
      $region22: #{_lambda_.1} parent=11 // pred_check_branch
        %280 = sbr.rel (%p278) target = $region24
      $region23: #{_lambda_.1} parent=11 // pred_region
        _
      $region24: #{_lambda_.1} parent=11 // pred_fallthru
        _
      // Predicated region
      $region25: #{_lambda_.1} parent=11 // pred_check
        %p281 = pneg %p126
      $region26: #{_lambda_.1} parent=11 // pred_check_branch
        %283 = sbr.rel (%p281) target = $region28
      $region27: #{_lambda_.1} parent=11 // pred_region
        _
      $region28: #{_lambda_.1} parent=11 // pred_fallthru
        _
      // Predicated region
      $region29: #{_lambda_.1} parent=11 // pred_check
        %p284 = pneg %p147
      $region30: #{_lambda_.1} parent=11 // pred_check_branch
        %286 = sbr.rel (%p284) target = $region32
      $region31: #{_lambda_.1} parent=11 // pred_region
        _
      $region32: #{_lambda_.1} parent=11 // pred_fallthru
        _
      // Predicated region
      $region33: #{_lambda_.1} parent=11 // pred_check
        %p287 = pneg %p168
      $region34: #{_lambda_.1} parent=11 // pred_check_branch
        %289 = sbr.rel (%p287) target = $region36
      $region35: #{_lambda_.1} parent=11 // pred_region
        _
      $region36: #{_lambda_.1} parent=11 // pred_fallthru
        _
      // Predicated region
      $region37: #{_lambda_.1} parent=11 // pred_check
        %p290 = pneg %p189
      $region38: #{_lambda_.1} parent=11 // pred_check_branch
        %292 = sbr.rel (%p290) target = $region40
      $region39: #{_lambda_.1} parent=11 // pred_region
        _
      $region40: #{_lambda_.1} parent=11 // pred_fallthru
        _
      // Predicated region
      $region41: #{_lambda_.1} parent=11 // pred_check
        %p293 = pneg %p210
      $region42: #{_lambda_.1} parent=11 // pred_check_branch
        %295 = sbr.rel (%p293) target = $region44
      $region43: #{_lambda_.1} parent=11 // pred_region
        _
      $region44: #{_lambda_.1} parent=11 // pred_fallthru
        _
      // Predicated region
      $region45: #{_lambda_.1} parent=11 // pred_check
        %p296 = pneg %p231
      $region46: #{_lambda_.1} parent=11 // pred_check_branch
        %298 = sbr.rel (%p296) target = $region48
      $region47: #{_lambda_.1} parent=11 // pred_region
        _
      $region48: #{_lambda_.1} parent=11 // pred_fallthru
        _
    $region12: #{_lambda_.1} parent=5 // pred_fallthru
      _
    %p299 = scmp.lt.s32.totalorder %s16, 2
    // Predicated region
    $region49: #{_lambda_.1} parent=5 // pred_check
      %p300 = pneg %p299
    $region50: #{_lambda_.1} parent=5 // pred_check_branch
      %302 = sbr.rel (%p300) target = $region52
    $region51: #{_lambda_.1} parent=5 // pred_region
      // Predicated region
      $region53: #{_lambda_.1} parent=51 // pred_check
        %p303 = pneg %p36
      $region54: #{_lambda_.1} parent=51 // pred_check_branch
        %305 = sbr.rel (%p303) target = $region56
      $region55: #{_lambda_.1} parent=51 // pred_region
        %s306 = smul.u32 2, %s16
        %p307 = scmp.lt.s32.totalorder %s306, 3
        %s308 = scalar_select %p307, %s306, 3
        %s309 = smul.addr %s308, 8
        %s310 = scalar_lea.vmem %s0, %s309
        %s311 = smul.u32 2, %s16
      $region56: #{_lambda_.1} parent=51 // pred_fallthru
        _
    $region52: #{_lambda_.1} parent=5 // pred_fallthru
      _
    %p312 = scmp.le.s32.totalorder 1, %s16
    %p313 = scmp.lt.s32.totalorder %s16, 3
    %p314 = pnand %p312, %p313
    %p315 = pneg %p314
    // Predicated region
    $region57: #{_lambda_.1} parent=5 // pred_check
      _
    $region58: #{_lambda_.1} parent=5 // pred_check_branch
      %317 = sbr.rel (%p314) target = $region60
    $region59: #{_lambda_.1} parent=5 // pred_region
      %s318 = ssub.s32 %s16, 1
      %s319 = smul.u32 2, %s21
      %p320 = scmp.lt.s32.totalorder %s319, 3
      %s321 = scalar_select %p320, %s319, 3
      %s322 = smul.addr %s321, 8
      %s323 = scalar_lea.vmem %s0, %s322
      %p324 = pneg %p42
      %p325 = pneg %p39
      %p326 = pneg %p63
      %p327 = pneg %p60
      %p328 = pneg %p84
      %p329 = pneg %p81
      %p330 = pneg %p105
      %p331 = pneg %p102
      %p332 = pneg %p126
      %p333 = pneg %p123
      %p334 = pneg %p147
      %p335 = pneg %p144
      %p336 = pneg %p168
      %p337 = pneg %p165
      %p338 = pneg %p189
      %p339 = pneg %p186
      %p340 = pneg %p210
      %p341 = pneg %p207
      %p342 = pneg %p231
      %p343 = pneg %p228
      %p344 = pneg %p257
      %p345 = pneg %p254
      %p346 = scmp.lt.s32.totalorder %s21, 1
      %s347 = scalar_select %p346, %s21, 1
      %s348 = smul.addr %s347, 8
      %s349 = scalar_lea.vmem %s10, %s348
      %s350 = smul.u32 2, %s21
      %p351 = scmp.lt.s32.totalorder %s350, 3
      %s352 = scalar_select %p351, %s350, 3
      %s353 = smul.addr %s352, 8
      %s354 = scalar_lea.vmem %s0, %s353
      %s355 = smul.u32 2, %s21
      %p356 = scmp.lt.s32.totalorder %s21, 1
      %s357 = scalar_select %p356, %s21, 1
      %s358 = smul.addr %s357, 8
      %s359 = scalar_lea.vmem %s10, %s358
      %v361 = vld [vmem:[%s354] sm:$0xff]
      %v362 = vld [vmem:[%s354 + $0x8] sm:$0xff]
      %v363 = vlaneseq
      %v364 = vshrl.u32 %v363, 7
      %v365 = vadd.s32 %v364, 8
      %vm366 = vcmp.lt.s32.totalorder %v364, 0
      %v367 = vsub.s32 0, %v364
      %v368 = vsel %vm366, %v367, %v364
      %v369 = vshrl.u32 %v368, 4
      %v370 = vand.u32 %v368, 15
      %v371 = vsub.s32 0, %v370
      %v372 = vsel %vm366, %v371, %v370
      %vm373 = vcmp.lt.s32.totalorder %v365, 0
      %v374 = vsub.s32 0, %v365
      %v375 = vsel %vm373, %v374, %v365
      %v376 = vshrl.u32 %v375, 4
      %v377 = vand.u32 %v375, 15
      %v378 = vsub.s32 0, %v377
      %v379 = vsel %vm373, %v378, %v377
      %vm380 = vcmp.ne.s32.totalorder %v372, 0
      %vm381 = vcmp.ne.s32.totalorder %v379, 0
      %vm382 = vcmp.lt.s32.totalorder %v372, 0
      %vm383 = vcmp.lt.s32.totalorder %v379, 0
      %vm384 = vmand %vm382, %vm380
      %vm385 = vmand %vm383, %vm381
      %v386 = vadd.s32 %v372, 16
      %v387 = vadd.s32 %v379, 16
      %v388 = vsel %vm384, %v386, %v372
      %v389 = vsel %vm385, %v387, %v379
      %vm390 = vcmp.eq.s32.totalorder %v388, 0
      %vm391 = vcmp.eq.s32.totalorder %v389, 0
      %vm392 = vcmp.eq.s32.totalorder %v388, 15
      %vm393 = vcmp.eq.s32.totalorder %v389, 15
      %394 = vst [vmem:[#allocation2 + $0x1] sm:$0xff] %v361
      %395 = vst [vmem:[#allocation2 + $0x9] sm:$0xff] %v362
      %v396 = vld [vmem:[#allocation2] sm:$0xff]
      %v397 = vld [vmem:[#allocation2 + $0x8] sm:$0xff]
      %v398 = vsel %vm390, 1, 0
      %v399 = vsel %vm391, 1, 0
      %vm400 = vcmp.eq.s32.totalorder %v398, 1
      %vm401 = vcmp.eq.s32.totalorder %v399, 1
      %v402 = vsel %vm400, 0.0, %v396
      %v403 = vsel %vm401, 0.0, %v397
      %v404 = vld [vmem:[#allocation2 + $0x2] sm:$0xff]
      %v405 = vld [vmem:[#allocation2 + $0xa] sm:$0xff]
      %v406 = vsel %vm392, 1, 0
      %v407 = vsel %vm393, 1, 0
      %vm408 = vcmp.eq.s32.totalorder %v406, 1
      %vm409 = vcmp.eq.s32.totalorder %v407, 1
      %v410 = vsel %vm408, 0.0, %v404
      %v411 = vsel %vm409, 0.0, %v405
      %v412 = vpack.c.bf16 %v403, %v402
      %v413 = vpack.c.bf16 %v362, %v361
      %v414 = vpack.c.bf16 %v411, %v410
      %v415 = vld [vmem:[%s1] sm:$0xf]
      %v416 = vld [vmem:[%s1 + $0x4] sm:$0xf]
      %v417 = vld [vmem:[%s1 + $0x8] sm:$0xf]
      %v418 = vld [vmem:[%s1 + $0xc] sm:$0xf]
      %v419 = vld [vmem:[%s1 + $0x10] sm:$0xf]
      %v420 = vld [vmem:[%s1 + $0x14] sm:$0xf]
      %v421 = vld [vmem:[%s1 + $0x18] sm:$0xf]
      %v422 = vld [vmem:[%s1 + $0x1c] sm:$0xf]
      %v423 = vld [vmem:[%s1 + $0x20] sm:$0xf]
      %v424 = vld [vmem:[%s1 + $0x24] sm:$0xf]
      %v425 = vld [vmem:[%s1 + $0x28] sm:$0xf]
      %v426 = vld [vmem:[%s1 + $0x2c] sm:$0xf]
      %v427 = vld [vmem:[%s1 + $0x30] sm:$0xf]
      %v428 = vld [vmem:[%s1 + $0x34] sm:$0xf]
      %v429 = vld [vmem:[%s1 + $0x38] sm:$0xf]
      %v430 = vld [vmem:[%s1 + $0x3c] sm:$0xf]
      %v431 = vld [vmem:[%s1 + $0x40] sm:$0xf]
      %v432 = vld [vmem:[%s1 + $0x44] sm:$0xf]
      %v433 = vld [vmem:[%s1 + $0x48] sm:$0xf]
      %v434 = vld [vmem:[%s1 + $0x4c] sm:$0xf]
      %v435 = vld [vmem:[%s1 + $0x50] sm:$0xf]
      %v436 = vld [vmem:[%s1 + $0x54] sm:$0xf]
      %v437 = vld [vmem:[%s1 + $0x58] sm:$0xf]
      %v438 = vld [vmem:[%s1 + $0x5c] sm:$0xf]
      %v439 = vld [vmem:[%s1 + $0x60] sm:$0xf]
      %v440 = vld [vmem:[%s1 + $0x64] sm:$0xf]
      %v441 = vld [vmem:[%s1 + $0x68] sm:$0xf]
      %v442 = vld [vmem:[%s1 + $0x6c] sm:$0xf]
      %v443 = vld [vmem:[%s1 + $0x70] sm:$0xf]
      %v444 = vld [vmem:[%s1 + $0x74] sm:$0xf]
      %v445 = vld [vmem:[%s1 + $0x78] sm:$0xf]
      %v446 = vld [vmem:[%s1 + $0x7c] sm:$0xf]
      %v447 = vld [vmem:[%s1 + $0x80] sm:$0xf]
      %v448 = vld [vmem:[%s1 + $0x84] sm:$0xf]
      %v449 = vld [vmem:[%s1 + $0x88] sm:$0xf]
      %v450 = vld [vmem:[%s1 + $0x8c] sm:$0xf]
      %v451 = vld [vmem:[%s1 + $0x90] sm:$0xf]
      %v452 = vld [vmem:[%s1 + $0x94] sm:$0xf]
      %v453 = vld [vmem:[%s1 + $0x98] sm:$0xf]
      %v454 = vld [vmem:[%s1 + $0x9c] sm:$0xf]
      %v455 = vld [vmem:[%s1 + $0xa0] sm:$0xf]
      %v456 = vld [vmem:[%s1 + $0xa4] sm:$0xf]
      %v457 = vld [vmem:[%s1 + $0xa8] sm:$0xf]
      %v458 = vld [vmem:[%s1 + $0xac] sm:$0xf]
      %v459 = vld [vmem:[%s1 + $0xb0] sm:$0xf]
      %v460 = vld [vmem:[%s1 + $0xb4] sm:$0xf]
      %v461 = vld [vmem:[%s1 + $0xb8] sm:$0xf]
      %v462 = vld [vmem:[%s1 + $0xbc] sm:$0xf]
      %v463 = vld [vmem:[%s2] sm:$0x1]
      %v465 = vlaneseq
      %v466 = vshrl.u32 %v465, 7
      %v467 = vsub.s32 0, %v466
      %v468 = vrot.slane %v463, %v467
      %v518 = vunpack.c.l.b16 %v415
      %v519 = vunpack.c.l.b16 %v416
      %v520 = vunpack.c.l.b16 %v417
      %v521 = vunpack.c.l.b16 %v418
      %v522 = vunpack.c.l.b16 %v419
      %v523 = vunpack.c.l.b16 %v420
      %v524 = vunpack.c.l.b16 %v421
      %v525 = vunpack.c.l.b16 %v422
      %v526 = vunpack.c.l.b16 %v423
      %v527 = vunpack.c.l.b16 %v424
      %v528 = vunpack.c.l.b16 %v425
      %v529 = vunpack.c.l.b16 %v426
      %v530 = vunpack.c.l.b16 %v427
      %v531 = vunpack.c.l.b16 %v428
      %v532 = vunpack.c.l.b16 %v429
      %v533 = vunpack.c.l.b16 %v430
      %v534 = vunpack.c.l.b16 %v431
      %v535 = vunpack.c.l.b16 %v432
      %v536 = vunpack.c.l.b16 %v433
      %v537 = vunpack.c.l.b16 %v434
      %v538 = vunpack.c.l.b16 %v435
      %v539 = vunpack.c.l.b16 %v436
      %v540 = vunpack.c.l.b16 %v437
      %v541 = vunpack.c.l.b16 %v438
      %v542 = vunpack.c.l.b16 %v439
      %v543 = vunpack.c.l.b16 %v440
      %v544 = vunpack.c.l.b16 %v441
      %v545 = vunpack.c.l.b16 %v442
      %v546 = vunpack.c.l.b16 %v443
      %v547 = vunpack.c.l.b16 %v444
      %v548 = vunpack.c.l.b16 %v445
      %v549 = vunpack.c.l.b16 %v446
      %v550 = vunpack.c.l.b16 %v447
      %v551 = vunpack.c.l.b16 %v448
      %v552 = vunpack.c.l.b16 %v449
      %v553 = vunpack.c.l.b16 %v450
      %v554 = vunpack.c.l.b16 %v451
      %v555 = vunpack.c.l.b16 %v452
      %v556 = vunpack.c.l.b16 %v453
      %v557 = vunpack.c.l.b16 %v454
      %v558 = vunpack.c.l.b16 %v455
      %v559 = vunpack.c.l.b16 %v456
      %v560 = vunpack.c.l.b16 %v457
      %v561 = vunpack.c.l.b16 %v458
      %v562 = vunpack.c.l.b16 %v459
      %v563 = vunpack.c.l.b16 %v460
      %v564 = vunpack.c.l.b16 %v461
      %v565 = vunpack.c.l.b16 %v462
      %v566 = vpack.c.b16 %v519, %v518
      %v567 = vpack.c.b16 %v521, %v520
      %v568 = vpack.c.b16 %v523, %v522
      %v569 = vpack.c.b16 %v525, %v524
      %v570 = vpack.c.b16 %v527, %v526
      %v571 = vpack.c.b16 %v529, %v528
      %v572 = vpack.c.b16 %v531, %v530
      %v573 = vpack.c.b16 %v533, %v532
      %v574 = vpack.c.b16 %v535, %v534
      %v575 = vpack.c.b16 %v537, %v536
      %v576 = vpack.c.b16 %v539, %v538
      %v577 = vpack.c.b16 %v541, %v540
      %v578 = vpack.c.b16 %v543, %v542
      %v579 = vpack.c.b16 %v545, %v544
      %v580 = vpack.c.b16 %v547, %v546
      %v581 = vpack.c.b16 %v549, %v548
      %v582 = vpack.c.b16 %v551, %v550
      %v583 = vpack.c.b16 %v553, %v552
      %v584 = vpack.c.b16 %v555, %v554
      %v585 = vpack.c.b16 %v557, %v556
      %v586 = vpack.c.b16 %v559, %v558
      %v587 = vpack.c.b16 %v561, %v560
      %v588 = vpack.c.b16 %v563, %v562
      %v589 = vpack.c.b16 %v565, %v564
      %614 = vmatprep.subr.bf16.mxu0 0
      %615 = vmatpush1.bf16.msra.mxu0 %v566
      %616 = vmatprep.subr.bf16.mxu0 0
      %617 = vmatpush1.bf16.msra.mxu0 %v567
      %618 = vmatprep.subr.bf16.mxu0 0
      %619 = vmatpush1.bf16.msra.mxu0 %v568
      %620 = vmatprep.subr.bf16.mxu0 0
      %621 = vmatpush1.bf16.msra.mxu0 %v569
      %622 = vmatprep.subr.bf16.mxu0 0
      %623 = vmatpush1.bf16.msra.mxu0 %v570
      %624 = vmatprep.subr.bf16.mxu0 0
      %625 = vmatpush1.bf16.msra.mxu0 %v571
      %626 = vmatprep.subr.bf16.mxu0 0
      %627 = vmatpush1.bf16.msra.mxu0 %v572
      %628 = vmatprep.subr.bf16.mxu0 0
      %629 = vmatpush1.bf16.msra.mxu0 %v573
      %630 = vmatprep.subr.bf16.mxu0 0
      %631 = vmatpush1.bf16.msra.mxu0 %v574
      %632 = vmatprep.subr.bf16.mxu0 0
      %633 = vmatpush1.bf16.msra.mxu0 %v575
      %634 = vmatprep.subr.bf16.mxu0 0
      %635 = vmatpush1.bf16.msra.mxu0 %v576
      %636 = vmatprep.subr.bf16.mxu0 0
      %637 = vmatpush1.bf16.msra.mxu0 %v577
      %638 = vmatprep.subr.bf16.mxu0 0
      %639 = vmatpush1.bf16.msra.mxu0 %v578
      %640 = vmatprep.subr.bf16.mxu0 0
      %641 = vmatpush1.bf16.msra.mxu0 %v579
      %642 = vmatprep.subr.bf16.mxu0 0
      %643 = vmatpush1.bf16.msra.mxu0 %v580
      %644 = vmatprep.subr.bf16.mxu0 0
      %645 = vmatpush1.bf16.msra.mxu0 %v581
      %646 = vmatprep.mubr.bf16.mxu0 %v413
      %647 = vmatmul.mubr.bf16.gmra.mrb[0].mxu0 %v412
      %v648 = vpop.f32.mrb[0].mxu0
      %v649 = vadd.f32 %v468, %v648
      %v650 = vpop.f32.mrb[0].mxu0
      %v651 = vpop.f32.mrb[0].mxu0
      %v652 = vadd.f32 %v468, %v651
      %v653 = vpop.f32.mrb[0].mxu0
      %654 = vdwg.mxu0
      %655 = vmatprep.subr.bf16.mxu0 0
      %656 = vmatpush1.bf16.msra.mxu0 %v582
      %657 = vmatprep.subr.bf16.mxu0 0
      %658 = vmatpush1.bf16.msra.mxu0 %v583
      %659 = vmatprep.subr.bf16.mxu0 0
      %660 = vmatpush1.bf16.msra.mxu0 %v584
      %661 = vmatprep.subr.bf16.mxu0 0
      %662 = vmatpush1.bf16.msra.mxu0 %v585
      %663 = vmatprep.subr.bf16.mxu0 0
      %664 = vmatpush1.bf16.msra.mxu0 %v586
      %665 = vmatprep.subr.bf16.mxu0 0
      %666 = vmatpush1.bf16.msra.mxu0 %v587
      %667 = vmatprep.subr.bf16.mxu0 0
      %668 = vmatpush1.bf16.msra.mxu0 %v588
      %669 = vmatprep.subr.bf16.mxu0 0
      %670 = vmatpush1.bf16.msra.mxu0 %v589
      %671 = vmatprep.subr.bf16.mxu0 0
      %672 = vmatpush1.bf16.msra.mxu0 0
      %673 = vmatprep.subr.bf16.mxu0 0
      %674 = vmatpush1.bf16.msra.mxu0 0
      %675 = vmatprep.subr.bf16.mxu0 0
      %676 = vmatpush1.bf16.msra.mxu0 0
      %677 = vmatprep.subr.bf16.mxu0 0
      %678 = vmatpush1.bf16.msra.mxu0 0
      %679 = vmatprep.subr.bf16.mxu0 0
      %680 = vmatpush1.bf16.msra.mxu0 0
      %681 = vmatprep.subr.bf16.mxu0 0
      %682 = vmatpush1.bf16.msra.mxu0 0
      %683 = vmatprep.subr.bf16.mxu0 0
      %684 = vmatpush1.bf16.msra.mxu0 0
      %685 = vmatprep.subr.bf16.mxu0 0
      %686 = vmatpush1.bf16.msra.mxu0 0
      %687 = vmatprep.mubr.bf16.mxu0 0
      %688 = vmatmul.mubr.bf16.gmra.mrb[0].mxu0 %v414
      %v689 = vpop.f32.mrb[0].mxu0
      %v690 = vadd.f32 %v649, %v689
      %v691 = vpop.f32.mrb[0].mxu0
      %v692 = vpop.f32.mrb[0].mxu0
      %v693 = vadd.f32 %v652, %v692
      %v694 = vpop.f32.mrb[0].mxu0
      %695 = vdwg.mxu0
      %v696 = vmax.f32 %v690, 0.0
      %v697 = vmax.f32 %v693, 0.0
      %698 = vst [vmem:[#allocation2 + $0x1] sm:$0xff] %v696
      %699 = vst [vmem:[#allocation2 + $0x9] sm:$0xff] %v697
      %v700 = vld [vmem:[#allocation2] sm:$0xff]
      %v701 = vld [vmem:[#allocation2 + $0x8] sm:$0xff]
      %v702 = vsel %vm400, 0.0, %v700
      %v703 = vsel %vm401, 0.0, %v701
      %v704 = vld [vmem:[#allocation2 + $0x2] sm:$0xff]
      %v705 = vld [vmem:[#allocation2 + $0xa] sm:$0xff]
      %v706 = vsel %vm408, 0.0, %v704
      %v707 = vsel %vm409, 0.0, %v705
      %v708 = vpack.c.bf16 %v703, %v702
      %v709 = vpack.c.bf16 %v697, %v696
      %v710 = vpack.c.bf16 %v707, %v706
      %v711 = vld [vmem:[%s3] sm:$0xf]
      %v712 = vld [vmem:[%s3 + $0x4] sm:$0xf]
      %v713 = vld [vmem:[%s3 + $0x8] sm:$0xf]
      %v714 = vld [vmem:[%s3 + $0xc] sm:$0xf]
      %v715 = vld [vmem:[%s3 + $0x10] sm:$0xf]
      %v716 = vld [vmem:[%s3 + $0x14] sm:$0xf]
      %v717 = vld [vmem:[%s3 + $0x18] sm:$0xf]
      %v718 = vld [vmem:[%s3 + $0x1c] sm:$0xf]
      %v719 = vld [vmem:[%s3 + $0x20] sm:$0xf]
      %v720 = vld [vmem:[%s3 + $0x24] sm:$0xf]
      %v721 = vld [vmem:[%s3 + $0x28] sm:$0xf]
      %v722 = vld [vmem:[%s3 + $0x2c] sm:$0xf]
      %v723 = vld [vmem:[%s3 + $0x30] sm:$0xf]
      %v724 = vld [vmem:[%s3 + $0x34] sm:$0xf]
      %v725 = vld [vmem:[%s3 + $0x38] sm:$0xf]
      %v726 = vld [vmem:[%s3 + $0x3c] sm:$0xf]
      %v727 = vld [vmem:[%s3 + $0x40] sm:$0xf]
      %v728 = vld [vmem:[%s3 + $0x44] sm:$0xf]
      %v729 = vld [vmem:[%s3 + $0x48] sm:$0xf]
      %v730 = vld [vmem:[%s3 + $0x4c] sm:$0xf]
      %v731 = vld [vmem:[%s3 + $0x50] sm:$0xf]
      %v732 = vld [vmem:[%s3 + $0x54] sm:$0xf]
      %v733 = vld [vmem:[%s3 + $0x58] sm:$0xf]
      %v734 = vld [vmem:[%s3 + $0x5c] sm:$0xf]
      %v735 = vld [vmem:[%s3 + $0x60] sm:$0xf]
      %v736 = vld [vmem:[%s3 + $0x64] sm:$0xf]
      %v737 = vld [vmem:[%s3 + $0x68] sm:$0xf]
      %v738 = vld [vmem:[%s3 + $0x6c] sm:$0xf]
      %v739 = vld [vmem:[%s3 + $0x70] sm:$0xf]
      %v740 = vld [vmem:[%s3 + $0x74] sm:$0xf]
      %v741 = vld [vmem:[%s3 + $0x78] sm:$0xf]
      %v742 = vld [vmem:[%s3 + $0x7c] sm:$0xf]
      %v743 = vld [vmem:[%s3 + $0x80] sm:$0xf]
      %v744 = vld [vmem:[%s3 + $0x84] sm:$0xf]
      %v745 = vld [vmem:[%s3 + $0x88] sm:$0xf]
      %v746 = vld [vmem:[%s3 + $0x8c] sm:$0xf]
      %v747 = vld [vmem:[%s3 + $0x90] sm:$0xf]
      %v748 = vld [vmem:[%s3 + $0x94] sm:$0xf]
      %v749 = vld [vmem:[%s3 + $0x98] sm:$0xf]
      %v750 = vld [vmem:[%s3 + $0x9c] sm:$0xf]
      %v751 = vld [vmem:[%s3 + $0xa0] sm:$0xf]
      %v752 = vld [vmem:[%s3 + $0xa4] sm:$0xf]
      %v753 = vld [vmem:[%s3 + $0xa8] sm:$0xf]
      %v754 = vld [vmem:[%s3 + $0xac] sm:$0xf]
      %v755 = vld [vmem:[%s3 + $0xb0] sm:$0xf]
      %v756 = vld [vmem:[%s3 + $0xb4] sm:$0xf]
      %v757 = vld [vmem:[%s3 + $0xb8] sm:$0xf]
      %v758 = vld [vmem:[%s3 + $0xbc] sm:$0xf]
      %v759 = vld [vmem:[%s4] sm:$0x1]
      %v761 = vlaneseq
      %v762 = vshrl.u32 %v761, 7
      %v763 = vsub.s32 0, %v762
      %v764 = vrot.slane %v759, %v763
      %v814 = vunpack.c.l.b16 %v711
      %v815 = vunpack.c.l.b16 %v712
      %v816 = vunpack.c.l.b16 %v713
      %v817 = vunpack.c.l.b16 %v714
      %v818 = vunpack.c.l.b16 %v715
      %v819 = vunpack.c.l.b16 %v716
      %v820 = vunpack.c.l.b16 %v717
      %v821 = vunpack.c.l.b16 %v718
      %v822 = vunpack.c.l.b16 %v719
      %v823 = vunpack.c.l.b16 %v720
      %v824 = vunpack.c.l.b16 %v721
      %v825 = vunpack.c.l.b16 %v722
      %v826 = vunpack.c.l.b16 %v723
      %v827 = vunpack.c.l.b16 %v724
      %v828 = vunpack.c.l.b16 %v725
      %v829 = vunpack.c.l.b16 %v726
      %v830 = vunpack.c.l.b16 %v727
      %v831 = vunpack.c.l.b16 %v728
      %v832 = vunpack.c.l.b16 %v729
      %v833 = vunpack.c.l.b16 %v730
      %v834 = vunpack.c.l.b16 %v731
      %v835 = vunpack.c.l.b16 %v732
      %v836 = vunpack.c.l.b16 %v733
      %v837 = vunpack.c.l.b16 %v734
      %v838 = vunpack.c.l.b16 %v735
      %v839 = vunpack.c.l.b16 %v736
      %v840 = vunpack.c.l.b16 %v737
      %v841 = vunpack.c.l.b16 %v738
      %v842 = vunpack.c.l.b16 %v739
      %v843 = vunpack.c.l.b16 %v740
      %v844 = vunpack.c.l.b16 %v741
      %v845 = vunpack.c.l.b16 %v742
      %v846 = vunpack.c.l.b16 %v743
      %v847 = vunpack.c.l.b16 %v744
      %v848 = vunpack.c.l.b16 %v745
      %v849 = vunpack.c.l.b16 %v746
      %v850 = vunpack.c.l.b16 %v747
      %v851 = vunpack.c.l.b16 %v748
      %v852 = vunpack.c.l.b16 %v749
      %v853 = vunpack.c.l.b16 %v750
      %v854 = vunpack.c.l.b16 %v751
      %v855 = vunpack.c.l.b16 %v752
      %v856 = vunpack.c.l.b16 %v753
      %v857 = vunpack.c.l.b16 %v754
      %v858 = vunpack.c.l.b16 %v755
      %v859 = vunpack.c.l.b16 %v756
      %v860 = vunpack.c.l.b16 %v757
      %v861 = vunpack.c.l.b16 %v758
      %v862 = vpack.c.b16 %v815, %v814
      %v863 = vpack.c.b16 %v817, %v816
      %v864 = vpack.c.b16 %v819, %v818
      %v865 = vpack.c.b16 %v821, %v820
      %v866 = vpack.c.b16 %v823, %v822
      %v867 = vpack.c.b16 %v825, %v824
      %v868 = vpack.c.b16 %v827, %v826
      %v869 = vpack.c.b16 %v829, %v828
      %v870 = vpack.c.b16 %v831, %v830
      %v871 = vpack.c.b16 %v833, %v832
      %v872 = vpack.c.b16 %v835, %v834
      %v873 = vpack.c.b16 %v837, %v836
      %v874 = vpack.c.b16 %v839, %v838
      %v875 = vpack.c.b16 %v841, %v840
      %v876 = vpack.c.b16 %v843, %v842
      %v877 = vpack.c.b16 %v845, %v844
      %v878 = vpack.c.b16 %v847, %v846
      %v879 = vpack.c.b16 %v849, %v848
      %v880 = vpack.c.b16 %v851, %v850
      %v881 = vpack.c.b16 %v853, %v852
      %v882 = vpack.c.b16 %v855, %v854
      %v883 = vpack.c.b16 %v857, %v856
      %v884 = vpack.c.b16 %v859, %v858
      %v885 = vpack.c.b16 %v861, %v860
      %910 = vmatprep.subr.bf16.mxu0 0
      %911 = vmatpush1.bf16.msra.mxu0 %v862
      %912 = vmatprep.subr.bf16.mxu0 0
      %913 = vmatpush1.bf16.msra.mxu0 %v863
      %914 = vmatprep.subr.bf16.mxu0 0
      %915 = vmatpush1.bf16.msra.mxu0 %v864
      %916 = vmatprep.subr.bf16.mxu0 0
      %917 = vmatpush1.bf16.msra.mxu0 %v865
      %918 = vmatprep.subr.bf16.mxu0 0
      %919 = vmatpush1.bf16.msra.mxu0 %v866
      %920 = vmatprep.subr.bf16.mxu0 0
      %921 = vmatpush1.bf16.msra.mxu0 %v867
      %922 = vmatprep.subr.bf16.mxu0 0
      %923 = vmatpush1.bf16.msra.mxu0 %v868
      %924 = vmatprep.subr.bf16.mxu0 0
      %925 = vmatpush1.bf16.msra.mxu0 %v869
      %926 = vmatprep.subr.bf16.mxu0 0
      %927 = vmatpush1.bf16.msra.mxu0 %v870
      %928 = vmatprep.subr.bf16.mxu0 0
      %929 = vmatpush1.bf16.msra.mxu0 %v871
      %930 = vmatprep.subr.bf16.mxu0 0
      %931 = vmatpush1.bf16.msra.mxu0 %v872
      %932 = vmatprep.subr.bf16.mxu0 0
      %933 = vmatpush1.bf16.msra.mxu0 %v873
      %934 = vmatprep.subr.bf16.mxu0 0
      %935 = vmatpush1.bf16.msra.mxu0 %v874
      %936 = vmatprep.subr.bf16.mxu0 0
      %937 = vmatpush1.bf16.msra.mxu0 %v875
      %938 = vmatprep.subr.bf16.mxu0 0
      %939 = vmatpush1.bf16.msra.mxu0 %v876
      %940 = vmatprep.subr.bf16.mxu0 0
      %941 = vmatpush1.bf16.msra.mxu0 %v877
      %942 = vmatprep.mubr.bf16.mxu0 %v709
      %943 = vmatmul.mubr.bf16.gmra.mrb[0].mxu0 %v708
      %v944 = vpop.f32.mrb[0].mxu0
      %v945 = vadd.f32 %v764, %v944
      %v946 = vpop.f32.mrb[0].mxu0
      %v947 = vpop.f32.mrb[0].mxu0
      %v948 = vadd.f32 %v764, %v947
      %v949 = vpop.f32.mrb[0].mxu0
      %950 = vdwg.mxu0
      %951 = vmatprep.subr.bf16.mxu0 0
      %952 = vmatpush1.bf16.msra.mxu0 %v878
      %953 = vmatprep.subr.bf16.mxu0 0
      %954 = vmatpush1.bf16.msra.mxu0 %v879
      %955 = vmatprep.subr.bf16.mxu0 0
      %956 = vmatpush1.bf16.msra.mxu0 %v880
      %957 = vmatprep.subr.bf16.mxu0 0
      %958 = vmatpush1.bf16.msra.mxu0 %v881
      %959 = vmatprep.subr.bf16.mxu0 0
      %960 = vmatpush1.bf16.msra.mxu0 %v882
      %961 = vmatprep.subr.bf16.mxu0 0
      %962 = vmatpush1.bf16.msra.mxu0 %v883
      %963 = vmatprep.subr.bf16.mxu0 0
      %964 = vmatpush1.bf16.msra.mxu0 %v884
      %965 = vmatprep.subr.bf16.mxu0 0
      %966 = vmatpush1.bf16.msra.mxu0 %v885
      %967 = vmatprep.subr.bf16.mxu0 0
      %968 = vmatpush1.bf16.msra.mxu0 0
      %969 = vmatprep.subr.bf16.mxu0 0
      %970 = vmatpush1.bf16.msra.mxu0 0
      %971 = vmatprep.subr.bf16.mxu0 0
      %972 = vmatpush1.bf16.msra.mxu0 0
      %973 = vmatprep.subr.bf16.mxu0 0
      %974 = vmatpush1.bf16.msra.mxu0 0
      %975 = vmatprep.subr.bf16.mxu0 0
      %976 = vmatpush1.bf16.msra.mxu0 0
      %977 = vmatprep.subr.bf16.mxu0 0
      %978 = vmatpush1.bf16.msra.mxu0 0
      %979 = vmatprep.subr.bf16.mxu0 0
      %980 = vmatpush1.bf16.msra.mxu0 0
      %981 = vmatprep.subr.bf16.mxu0 0
      %982 = vmatpush1.bf16.msra.mxu0 0
      %983 = vmatprep.mubr.bf16.mxu0 0
      %984 = vmatmul.mubr.bf16.gmra.mrb[0].mxu0 %v710
      %v985 = vpop.f32.mrb[0].mxu0
      %v986 = vadd.f32 %v945, %v985
      %v987 = vpop.f32.mrb[0].mxu0
      %v988 = vpop.f32.mrb[0].mxu0
      %v989 = vadd.f32 %v948, %v988
      %v990 = vpop.f32.mrb[0].mxu0
      %991 = vdwg.mxu0
      %v992 = vmax.f32 %v986, 0.0
      %v993 = vmax.f32 %v989, 0.0
      %v994 = vld [vmem:[%s5] sm:$0xff]
      %vm995 = vcmask 130048
      %v997 = vsel %vm995, %v994, 0
      %999 = vmatprep.subr.mxu0 0.0
      %1000 = vmatpush1.msra.mxu0 %v992
      %1001 = vmatprep.subr.mxu0 0.0
      %1002 = vmatpush1.msra.mxu0 %v993
      %1003 = vmatprep.subr.mxu0 0.0
      %1004 = vmatpush1.msra.mxu0 0.0
      %1005 = vmatprep.subr.mxu0 0.0
      %1006 = vmatpush1.msra.mxu0 0.0
      %1007 = vmatprep.subr.mxu0 0.0
      %1008 = vmatpush1.msra.mxu0 0.0
      %1009 = vmatprep.subr.mxu0 0.0
      %1010 = vmatpush1.msra.mxu0 0.0
      %1011 = vmatprep.subr.mxu0 0.0
      %1012 = vmatpush1.msra.mxu0 0.0
      %1013 = vmatprep.subr.mxu0 0.0
      %1014 = vmatpush1.msra.mxu0 0.0
      %1015 = vmatprep.subr.mxu0 0.0
      %1016 = vmatpush1.msra.mxu0 0.0
      %1017 = vmatprep.subr.mxu0 0.0
      %1018 = vmatpush1.msra.mxu0 0.0
      %1019 = vmatprep.subr.mxu0 0.0
      %1020 = vmatpush1.msra.mxu0 0.0
      %1021 = vmatprep.subr.mxu0 0.0
      %1022 = vmatpush1.msra.mxu0 0.0
      %1023 = vmatprep.subr.mxu0 0.0
      %1024 = vmatpush1.msra.mxu0 0.0
      %1025 = vmatprep.subr.mxu0 0.0
      %1026 = vmatpush1.msra.mxu0 0.0
      %1027 = vmatprep.subr.mxu0 0.0
      %1028 = vmatpush1.msra.mxu0 0.0
      %1029 = vmatprep.subr.mxu0 0.0
      %1030 = vmatpush1.msra.mxu0 0.0
      %1031 = vmatprep.subr.mxu0 0.0
      %1032 = vmatpush1.msra.mxu0 0.0
      %1033 = vmatprep.subr.mxu0 0.0
      %1034 = vmatpush1.msra.mxu0 0.0
      %1035 = vmatprep.subr.mxu0 0.0
      %1036 = vmatpush1.msra.mxu0 0.0
      %1037 = vmatprep.subr.mxu0 0.0
      %1038 = vmatpush1.msra.mxu0 0.0
      %1039 = vmatprep.subr.mxu0 0.0
      %1040 = vmatpush1.msra.mxu0 0.0
      %1041 = vmatprep.subr.mxu0 0.0
      %1042 = vmatpush1.msra.mxu0 0.0
      %1043 = vmatprep.subr.mxu0 0.0
      %1044 = vmatpush1.msra.mxu0 0.0
      %1045 = vmatprep.subr.mxu0 0.0
      %1046 = vmatpush1.msra.mxu0 0.0
      %1047 = vmatprep.subr.mxu0 0.0
      %1048 = vmatpush1.msra.mxu0 0.0
      %1049 = vmatprep.subr.mxu0 0.0
      %1050 = vmatpush1.msra.mxu0 0.0
      %1051 = vmatprep.subr.mxu0 0.0
      %1052 = vmatpush1.msra.mxu0 0.0
      %1053 = vmatprep.subr.mxu0 0.0
      %1054 = vmatpush1.msra.mxu0 0.0
      %1055 = vmatprep.subr.mxu0 0.0
      %1056 = vmatpush1.msra.mxu0 0.0
      %1057 = vmatprep.subr.mxu0 0.0
      %1058 = vmatpush1.msra.mxu0 0.0
      %1059 = vmatprep.subr.mxu0 0.0
      %1060 = vmatpush1.msra.mxu0 0.0
      %1061 = vmatprep.subr.mxu0 0.0
      %1062 = vmatpush1.msra.mxu0 0.0
      %1063 = vmatprep.mubr.f32.mxu0 0.0
      %1064 = vmatmul.mubr.f32.gmra.mrb[0].mxu0 %v997
      %v1065 = vpop.f32.mrb[0].mxu0
      %v1066 = vadd.f32 0.0, %v1065
      %v1067 = vpop.f32.mrb[0].mxu0
      %1068 = vdwg.mxu0
      %vm1069 = vcmp.lt.s32.totalorder %v364, 0
      %v1070 = vsub.s32 0, %v364
      %v1071 = vsel %vm1069, %v1070, %v364
      %v1072 = vshrl.u32 %v1071, 3
      %v1073 = vand.u32 %v1071, 7
      %v1074 = vsub.s32 0, %v1073
      %v1075 = vsel %vm1069, %v1074, %v1073
      %vm1076 = vcmp.ne.s32.totalorder %v1075, 0
      %vm1077 = vcmp.lt.s32.totalorder %v1075, 0
      %vm1078 = vmand %vm1077, %vm1076
      %v1079 = vadd.s32 %v1075, 8
      %v1080 = vsel %vm1078, %v1079, %v1075
      %vm1081 = vcmp.eq.s32.totalorder %v1080, 0
      %vm1082 = vcmp.eq.s32.totalorder %v1080, 7
      %1083 = vst [vmem:[#allocation3 + $0x1] sm:$0xff] %v1066
      %v1084 = vld [vmem:[#allocation3] sm:$0xff]
      %v1085 = vsel %vm1081, 1, 0
      %vm1086 = vcmp.eq.s32.totalorder %v1085, 1
      %v1087 = vsel %vm1086, 0.0, %v1084
      %v1088 = vld [vmem:[#allocation3 + $0x2] sm:$0xff]
      %v1089 = vsel %vm1082, 1, 0
      %vm1090 = vcmp.eq.s32.totalorder %v1089, 1
      %v1091 = vsel %vm1090, 0.0, %v1088
      %v1092 = vpack.c.bf16 %v1087, %v1087
      %v1093 = vpack.c.bf16 %v1066, %v1066
      %v1094 = vpack.c.bf16 %v1091, %v1091
      %v1095 = vld [vmem:[%s6] sm:$0xf]
      %v1096 = vld [vmem:[%s6 + $0x4] sm:$0xf]
      %v1097 = vld [vmem:[%s6 + $0x8] sm:$0xf]
      %v1098 = vld [vmem:[%s6 + $0xc] sm:$0xf]
      %v1099 = vld [vmem:[%s6 + $0x10] sm:$0xf]
      %v1100 = vld [vmem:[%s6 + $0x14] sm:$0xf]
      %v1101 = vld [vmem:[%s6 + $0x18] sm:$0xf]
      %v1102 = vld [vmem:[%s6 + $0x1c] sm:$0xf]
      %v1103 = vld [vmem:[%s6 + $0x20] sm:$0xf]
      %v1104 = vld [vmem:[%s6 + $0x24] sm:$0xf]
      %v1105 = vld [vmem:[%s6 + $0x28] sm:$0xf]
      %v1106 = vld [vmem:[%s6 + $0x2c] sm:$0xf]
      %v1107 = vld [vmem:[%s6 + $0x30] sm:$0xf]
      %v1108 = vld [vmem:[%s6 + $0x34] sm:$0xf]
      %v1109 = vld [vmem:[%s6 + $0x38] sm:$0xf]
      %v1110 = vld [vmem:[%s6 + $0x3c] sm:$0xf]
      %v1111 = vld [vmem:[%s6 + $0x40] sm:$0xf]
      %v1112 = vld [vmem:[%s6 + $0x44] sm:$0xf]
      %v1113 = vld [vmem:[%s6 + $0x48] sm:$0xf]
      %v1114 = vld [vmem:[%s6 + $0x4c] sm:$0xf]
      %v1115 = vld [vmem:[%s6 + $0x50] sm:$0xf]
      %v1116 = vld [vmem:[%s6 + $0x54] sm:$0xf]
      %v1117 = vld [vmem:[%s6 + $0x58] sm:$0xf]
      %v1118 = vld [vmem:[%s6 + $0x5c] sm:$0xf]
      %v1119 = vld [vmem:[%s6 + $0x60] sm:$0xf]
      %v1120 = vld [vmem:[%s6 + $0x64] sm:$0xf]
      %v1121 = vld [vmem:[%s6 + $0x68] sm:$0xf]
      %v1122 = vld [vmem:[%s6 + $0x6c] sm:$0xf]
      %v1123 = vld [vmem:[%s6 + $0x70] sm:$0xf]
      %v1124 = vld [vmem:[%s6 + $0x74] sm:$0xf]
      %v1125 = vld [vmem:[%s6 + $0x78] sm:$0xf]
      %v1126 = vld [vmem:[%s6 + $0x7c] sm:$0xf]
      %v1127 = vld [vmem:[%s6 + $0x80] sm:$0xf]
      %v1128 = vld [vmem:[%s6 + $0x84] sm:$0xf]
      %v1129 = vld [vmem:[%s6 + $0x88] sm:$0xf]
      %v1130 = vld [vmem:[%s6 + $0x8c] sm:$0xf]
      %v1131 = vld [vmem:[%s6 + $0x90] sm:$0xf]
      %v1132 = vld [vmem:[%s6 + $0x94] sm:$0xf]
      %v1133 = vld [vmem:[%s6 + $0x98] sm:$0xf]
      %v1134 = vld [vmem:[%s6 + $0x9c] sm:$0xf]
      %v1135 = vld [vmem:[%s6 + $0xa0] sm:$0xf]
      %v1136 = vld [vmem:[%s6 + $0xa4] sm:$0xf]
      %v1137 = vld [vmem:[%s6 + $0xa8] sm:$0xf]
      %v1138 = vld [vmem:[%s6 + $0xac] sm:$0xf]
      %v1139 = vld [vmem:[%s6 + $0xb0] sm:$0xf]
      %v1140 = vld [vmem:[%s6 + $0xb4] sm:$0xf]
      %v1141 = vld [vmem:[%s6 + $0xb8] sm:$0xf]
      %v1142 = vld [vmem:[%s6 + $0xbc] sm:$0xf]
      %v1143 = vld [vmem:[%s7] sm:$0x1]
      %v1145 = vlaneseq
      %v1146 = vshrl.u32 %v1145, 7
      %v1147 = vsub.s32 0, %v1146
      %v1148 = vrot.slane %v1143, %v1147
      %v1198 = vunpack.c.l.b16 %v1095
      %v1199 = vunpack.c.l.b16 %v1096
      %v1200 = vunpack.c.l.b16 %v1097
      %v1201 = vunpack.c.l.b16 %v1098
      %v1202 = vunpack.c.l.b16 %v1099
      %v1203 = vunpack.c.l.b16 %v1100
      %v1204 = vunpack.c.l.b16 %v1101
      %v1205 = vunpack.c.l.b16 %v1102
      %v1206 = vunpack.c.l.b16 %v1103
      %v1207 = vunpack.c.l.b16 %v1104
      %v1208 = vunpack.c.l.b16 %v1105
      %v1209 = vunpack.c.l.b16 %v1106
      %v1210 = vunpack.c.l.b16 %v1107
      %v1211 = vunpack.c.l.b16 %v1108
      %v1212 = vunpack.c.l.b16 %v1109
      %v1213 = vunpack.c.l.b16 %v1110
      %v1214 = vunpack.c.l.b16 %v1111
      %v1215 = vunpack.c.l.b16 %v1112
      %v1216 = vunpack.c.l.b16 %v1113
      %v1217 = vunpack.c.l.b16 %v1114
      %v1218 = vunpack.c.l.b16 %v1115
      %v1219 = vunpack.c.l.b16 %v1116
      %v1220 = vunpack.c.l.b16 %v1117
      %v1221 = vunpack.c.l.b16 %v1118
      %v1222 = vunpack.c.l.b16 %v1119
      %v1223 = vunpack.c.l.b16 %v1120
      %v1224 = vunpack.c.l.b16 %v1121
      %v1225 = vunpack.c.l.b16 %v1122
      %v1226 = vunpack.c.l.b16 %v1123
      %v1227 = vunpack.c.l.b16 %v1124
      %v1228 = vunpack.c.l.b16 %v1125
      %v1229 = vunpack.c.l.b16 %v1126
      %v1230 = vunpack.c.l.b16 %v1127
      %v1231 = vunpack.c.l.b16 %v1128
      %v1232 = vunpack.c.l.b16 %v1129
      %v1233 = vunpack.c.l.b16 %v1130
      %v1234 = vunpack.c.l.b16 %v1131
      %v1235 = vunpack.c.l.b16 %v1132
      %v1236 = vunpack.c.l.b16 %v1133
      %v1237 = vunpack.c.l.b16 %v1134
      %v1238 = vunpack.c.l.b16 %v1135
      %v1239 = vunpack.c.l.b16 %v1136
      %v1240 = vunpack.c.l.b16 %v1137
      %v1241 = vunpack.c.l.b16 %v1138
      %v1242 = vunpack.c.l.b16 %v1139
      %v1243 = vunpack.c.l.b16 %v1140
      %v1244 = vunpack.c.l.b16 %v1141
      %v1245 = vunpack.c.l.b16 %v1142
      %v1246 = vpack.c.b16 %v1199, %v1198
      %v1247 = vpack.c.b16 %v1201, %v1200
      %v1248 = vpack.c.b16 %v1203, %v1202
      %v1249 = vpack.c.b16 %v1205, %v1204
      %v1250 = vpack.c.b16 %v1207, %v1206
      %v1251 = vpack.c.b16 %v1209, %v1208
      %v1252 = vpack.c.b16 %v1211, %v1210
      %v1253 = vpack.c.b16 %v1213, %v1212
      %v1254 = vpack.c.b16 %v1215, %v1214
      %v1255 = vpack.c.b16 %v1217, %v1216
      %v1256 = vpack.c.b16 %v1219, %v1218
      %v1257 = vpack.c.b16 %v1221, %v1220
      %v1258 = vpack.c.b16 %v1223, %v1222
      %v1259 = vpack.c.b16 %v1225, %v1224
      %v1260 = vpack.c.b16 %v1227, %v1226
      %v1261 = vpack.c.b16 %v1229, %v1228
      %v1262 = vpack.c.b16 %v1231, %v1230
      %v1263 = vpack.c.b16 %v1233, %v1232
      %v1264 = vpack.c.b16 %v1235, %v1234
      %v1265 = vpack.c.b16 %v1237, %v1236
      %v1266 = vpack.c.b16 %v1239, %v1238
      %v1267 = vpack.c.b16 %v1241, %v1240
      %v1268 = vpack.c.b16 %v1243, %v1242
      %v1269 = vpack.c.b16 %v1245, %v1244
      %1294 = vmatprep.subr.bf16.mxu0 0
      %1295 = vmatpush1.bf16.msra.mxu0 %v1246
      %1296 = vmatprep.subr.bf16.mxu0 0
      %1297 = vmatpush1.bf16.msra.mxu0 %v1247
      %1298 = vmatprep.subr.bf16.mxu0 0
      %1299 = vmatpush1.bf16.msra.mxu0 %v1248
      %1300 = vmatprep.subr.bf16.mxu0 0
      %1301 = vmatpush1.bf16.msra.mxu0 %v1249
      %1302 = vmatprep.subr.bf16.mxu0 0
      %1303 = vmatpush1.bf16.msra.mxu0 %v1250
      %1304 = vmatprep.subr.bf16.mxu0 0
      %1305 = vmatpush1.bf16.msra.mxu0 %v1251
      %1306 = vmatprep.subr.bf16.mxu0 0
      %1307 = vmatpush1.bf16.msra.mxu0 %v1252
      %1308 = vmatprep.subr.bf16.mxu0 0
      %1309 = vmatpush1.bf16.msra.mxu0 %v1253
      %1310 = vmatprep.subr.bf16.mxu0 0
      %1311 = vmatpush1.bf16.msra.mxu0 %v1254
      %1312 = vmatprep.subr.bf16.mxu0 0
      %1313 = vmatpush1.bf16.msra.mxu0 %v1255
      %1314 = vmatprep.subr.bf16.mxu0 0
      %1315 = vmatpush1.bf16.msra.mxu0 %v1256
      %1316 = vmatprep.subr.bf16.mxu0 0
      %1317 = vmatpush1.bf16.msra.mxu0 %v1257
      %1318 = vmatprep.subr.bf16.mxu0 0
      %1319 = vmatpush1.bf16.msra.mxu0 %v1258
      %1320 = vmatprep.subr.bf16.mxu0 0
      %1321 = vmatpush1.bf16.msra.mxu0 %v1259
      %1322 = vmatprep.subr.bf16.mxu0 0
      %1323 = vmatpush1.bf16.msra.mxu0 %v1260
      %1324 = vmatprep.subr.bf16.mxu0 0
      %1325 = vmatpush1.bf16.msra.mxu0 %v1261
      %1326 = vmatprep.mubr.bf16.mxu0 %v1093
      %1327 = vmatmul.mubr.bf16.gmra.mrb[0].mxu0 %v1092
      %v1328 = vpop.f32.mrb[0].mxu0
      %v1329 = vadd.f32 %v1148, %v1328
      %v1330 = vpop.f32.mrb[0].mxu0
      %v1331 = vpop.f32.mrb[0].mxu0
      %v1332 = vpop.f32.mrb[0].mxu0
      %1333 = vdwg.mxu0
      %1334 = vmatprep.subr.bf16.mxu0 0
      %1335 = vmatpush1.bf16.msra.mxu0 %v1262
      %1336 = vmatprep.subr.bf16.mxu0 0
      %1337 = vmatpush1.bf16.msra.mxu0 %v1263
      %1338 = vmatprep.subr.bf16.mxu0 0
      %1339 = vmatpush1.bf16.msra.mxu0 %v1264
      %1340 = vmatprep.subr.bf16.mxu0 0
      %1341 = vmatpush1.bf16.msra.mxu0 %v1265
      %1342 = vmatprep.subr.bf16.mxu0 0
      %1343 = vmatpush1.bf16.msra.mxu0 %v1266
      %1344 = vmatprep.subr.bf16.mxu0 0
      %1345 = vmatpush1.bf16.msra.mxu0 %v1267
      %1346 = vmatprep.subr.bf16.mxu0 0
      %1347 = vmatpush1.bf16.msra.mxu0 %v1268
      %1348 = vmatprep.subr.bf16.mxu0 0
      %1349 = vmatpush1.bf16.msra.mxu0 %v1269
      %1350 = vmatprep.subr.bf16.mxu0 0
      %1351 = vmatpush1.bf16.msra.mxu0 0
      %1352 = vmatprep.subr.bf16.mxu0 0
      %1353 = vmatpush1.bf16.msra.mxu0 0
      %1354 = vmatprep.subr.bf16.mxu0 0
      %1355 = vmatpush1.bf16.msra.mxu0 0
      %1356 = vmatprep.subr.bf16.mxu0 0
      %1357 = vmatpush1.bf16.msra.mxu0 0
      %1358 = vmatprep.subr.bf16.mxu0 0
      %1359 = vmatpush1.bf16.msra.mxu0 0
      %1360 = vmatprep.subr.bf16.mxu0 0
      %1361 = vmatpush1.bf16.msra.mxu0 0
      %1362 = vmatprep.subr.bf16.mxu0 0
      %1363 = vmatpush1.bf16.msra.mxu0 0
      %1364 = vmatprep.subr.bf16.mxu0 0
      %1365 = vmatpush1.bf16.msra.mxu0 0
      %1366 = vmatprep.mubr.bf16.mxu0 0
      %1367 = vmatmul.mubr.bf16.gmra.mrb[0].mxu0 %v1094
      %v1368 = vpop.f32.mrb[0].mxu0
      %v1369 = vadd.f32 %v1329, %v1368
      %v1370 = vpop.f32.mrb[0].mxu0
      %v1371 = vpop.f32.mrb[0].mxu0
      %v1372 = vpop.f32.mrb[0].mxu0
      %1373 = vdwg.mxu0
      %v1374 = vmax.f32 %v1369, 0.0
      %1375 = vst [vmem:[#allocation3 + $0x1] sm:$0xff] %v1374
      %v1376 = vld [vmem:[#allocation3] sm:$0xff]
      %v1377 = vsel %vm1086, 0.0, %v1376
      %v1378 = vld [vmem:[#allocation3 + $0x2] sm:$0xff]
      %v1379 = vsel %vm1090, 0.0, %v1378
      %v1380 = vpack.c.bf16 %v1377, %v1377
      %v1381 = vpack.c.bf16 %v1374, %v1374
      %v1382 = vpack.c.bf16 %v1379, %v1379
      %v1383 = vld [vmem:[%s8] sm:$0xf]
      %v1384 = vld [vmem:[%s8 + $0x4] sm:$0xf]
      %v1385 = vld [vmem:[%s8 + $0x8] sm:$0xf]
      %v1386 = vld [vmem:[%s8 + $0xc] sm:$0xf]
      %v1387 = vld [vmem:[%s8 + $0x10] sm:$0xf]
      %v1388 = vld [vmem:[%s8 + $0x14] sm:$0xf]
      %v1389 = vld [vmem:[%s8 + $0x18] sm:$0xf]
      %v1390 = vld [vmem:[%s8 + $0x1c] sm:$0xf]
      %v1391 = vld [vmem:[%s8 + $0x20] sm:$0xf]
      %v1392 = vld [vmem:[%s8 + $0x24] sm:$0xf]
      %v1393 = vld [vmem:[%s8 + $0x28] sm:$0xf]
      %v1394 = vld [vmem:[%s8 + $0x2c] sm:$0xf]
      %v1395 = vld [vmem:[%s8 + $0x30] sm:$0xf]
      %v1396 = vld [vmem:[%s8 + $0x34] sm:$0xf]
      %v1397 = vld [vmem:[%s8 + $0x38] sm:$0xf]
      %v1398 = vld [vmem:[%s8 + $0x3c] sm:$0xf]
      %v1399 = vld [vmem:[%s8 + $0x40] sm:$0xf]
      %v1400 = vld [vmem:[%s8 + $0x44] sm:$0xf]
      %v1401 = vld [vmem:[%s8 + $0x48] sm:$0xf]
      %v1402 = vld [vmem:[%s8 + $0x4c] sm:$0xf]
      %v1403 = vld [vmem:[%s8 + $0x50] sm:$0xf]
      %v1404 = vld [vmem:[%s8 + $0x54] sm:$0xf]
      %v1405 = vld [vmem:[%s8 + $0x58] sm:$0xf]
      %v1406 = vld [vmem:[%s8 + $0x5c] sm:$0xf]
      %v1407 = vld [vmem:[%s8 + $0x60] sm:$0xf]
      %v1408 = vld [vmem:[%s8 + $0x64] sm:$0xf]
      %v1409 = vld [vmem:[%s8 + $0x68] sm:$0xf]
      %v1410 = vld [vmem:[%s8 + $0x6c] sm:$0xf]
      %v1411 = vld [vmem:[%s8 + $0x70] sm:$0xf]
      %v1412 = vld [vmem:[%s8 + $0x74] sm:$0xf]
      %v1413 = vld [vmem:[%s8 + $0x78] sm:$0xf]
      %v1414 = vld [vmem:[%s8 + $0x7c] sm:$0xf]
      %v1415 = vld [vmem:[%s8 + $0x80] sm:$0xf]
      %v1416 = vld [vmem:[%s8 + $0x84] sm:$0xf]
      %v1417 = vld [vmem:[%s8 + $0x88] sm:$0xf]
      %v1418 = vld [vmem:[%s8 + $0x8c] sm:$0xf]
      %v1419 = vld [vmem:[%s8 + $0x90] sm:$0xf]
      %v1420 = vld [vmem:[%s8 + $0x94] sm:$0xf]
      %v1421 = vld [vmem:[%s8 + $0x98] sm:$0xf]
      %v1422 = vld [vmem:[%s8 + $0x9c] sm:$0xf]
      %v1423 = vld [vmem:[%s8 + $0xa0] sm:$0xf]
      %v1424 = vld [vmem:[%s8 + $0xa4] sm:$0xf]
      %v1425 = vld [vmem:[%s8 + $0xa8] sm:$0xf]
      %v1426 = vld [vmem:[%s8 + $0xac] sm:$0xf]
      %v1427 = vld [vmem:[%s8 + $0xb0] sm:$0xf]
      %v1428 = vld [vmem:[%s8 + $0xb4] sm:$0xf]
      %v1429 = vld [vmem:[%s8 + $0xb8] sm:$0xf]
      %v1430 = vld [vmem:[%s8 + $0xbc] sm:$0xf]
      %v1431 = vld [vmem:[%s9] sm:$0x1]
      %v1433 = vlaneseq
      %v1434 = vshrl.u32 %v1433, 7
      %v1435 = vsub.s32 0, %v1434
      %v1436 = vrot.slane %v1431, %v1435
      %v1486 = vunpack.c.l.b16 %v1383
      %v1487 = vunpack.c.l.b16 %v1384
      %v1488 = vunpack.c.l.b16 %v1385
      %v1489 = vunpack.c.l.b16 %v1386
      %v1490 = vunpack.c.l.b16 %v1387
      %v1491 = vunpack.c.l.b16 %v1388
      %v1492 = vunpack.c.l.b16 %v1389
      %v1493 = vunpack.c.l.b16 %v1390
      %v1494 = vunpack.c.l.b16 %v1391
      %v1495 = vunpack.c.l.b16 %v1392
      %v1496 = vunpack.c.l.b16 %v1393
      %v1497 = vunpack.c.l.b16 %v1394
      %v1498 = vunpack.c.l.b16 %v1395
      %v1499 = vunpack.c.l.b16 %v1396
      %v1500 = vunpack.c.l.b16 %v1397
      %v1501 = vunpack.c.l.b16 %v1398
      %v1502 = vunpack.c.l.b16 %v1399
      %v1503 = vunpack.c.l.b16 %v1400
      %v1504 = vunpack.c.l.b16 %v1401
      %v1505 = vunpack.c.l.b16 %v1402
      %v1506 = vunpack.c.l.b16 %v1403
      %v1507 = vunpack.c.l.b16 %v1404
      %v1508 = vunpack.c.l.b16 %v1405
      %v1509 = vunpack.c.l.b16 %v1406
      %v1510 = vunpack.c.l.b16 %v1407
      %v1511 = vunpack.c.l.b16 %v1408
      %v1512 = vunpack.c.l.b16 %v1409
      %v1513 = vunpack.c.l.b16 %v1410
      %v1514 = vunpack.c.l.b16 %v1411
      %v1515 = vunpack.c.l.b16 %v1412
      %v1516 = vunpack.c.l.b16 %v1413
      %v1517 = vunpack.c.l.b16 %v1414
      %v1518 = vunpack.c.l.b16 %v1415
      %v1519 = vunpack.c.l.b16 %v1416
      %v1520 = vunpack.c.l.b16 %v1417
      %v1521 = vunpack.c.l.b16 %v1418
      %v1522 = vunpack.c.l.b16 %v1419
      %v1523 = vunpack.c.l.b16 %v1420
      %v1524 = vunpack.c.l.b16 %v1421
      %v1525 = vunpack.c.l.b16 %v1422
      %v1526 = vunpack.c.l.b16 %v1423
      %v1527 = vunpack.c.l.b16 %v1424
      %v1528 = vunpack.c.l.b16 %v1425
      %v1529 = vunpack.c.l.b16 %v1426
      %v1530 = vunpack.c.l.b16 %v1427
      %v1531 = vunpack.c.l.b16 %v1428
      %v1532 = vunpack.c.l.b16 %v1429
      %v1533 = vunpack.c.l.b16 %v1430
      %v1534 = vpack.c.b16 %v1487, %v1486
      %v1535 = vpack.c.b16 %v1489, %v1488
      %v1536 = vpack.c.b16 %v1491, %v1490
      %v1537 = vpack.c.b16 %v1493, %v1492
      %v1538 = vpack.c.b16 %v1495, %v1494
      %v1539 = vpack.c.b16 %v1497, %v1496
      %v1540 = vpack.c.b16 %v1499, %v1498
      %v1541 = vpack.c.b16 %v1501, %v1500
      %v1542 = vpack.c.b16 %v1503, %v1502
      %v1543 = vpack.c.b16 %v1505, %v1504
      %v1544 = vpack.c.b16 %v1507, %v1506
      %v1545 = vpack.c.b16 %v1509, %v1508
      %v1546 = vpack.c.b16 %v1511, %v1510
      %v1547 = vpack.c.b16 %v1513, %v1512
      %v1548 = vpack.c.b16 %v1515, %v1514
      %v1549 = vpack.c.b16 %v1517, %v1516
      %v1550 = vpack.c.b16 %v1519, %v1518
      %v1551 = vpack.c.b16 %v1521, %v1520
      %v1552 = vpack.c.b16 %v1523, %v1522
      %v1553 = vpack.c.b16 %v1525, %v1524
      %v1554 = vpack.c.b16 %v1527, %v1526
      %v1555 = vpack.c.b16 %v1529, %v1528
      %v1556 = vpack.c.b16 %v1531, %v1530
      %v1557 = vpack.c.b16 %v1533, %v1532
      %1582 = vmatprep.subr.bf16.mxu0 0
      %1583 = vmatpush1.bf16.msra.mxu0 %v1534
      %1584 = vmatprep.subr.bf16.mxu0 0
      %1585 = vmatpush1.bf16.msra.mxu0 %v1535
      %1586 = vmatprep.subr.bf16.mxu0 0
      %1587 = vmatpush1.bf16.msra.mxu0 %v1536
      %1588 = vmatprep.subr.bf16.mxu0 0
      %1589 = vmatpush1.bf16.msra.mxu0 %v1537
      %1590 = vmatprep.subr.bf16.mxu0 0
      %1591 = vmatpush1.bf16.msra.mxu0 %v1538
      %1592 = vmatprep.subr.bf16.mxu0 0
      %1593 = vmatpush1.bf16.msra.mxu0 %v1539
      %1594 = vmatprep.subr.bf16.mxu0 0
      %1595 = vmatpush1.bf16.msra.mxu0 %v1540
      %1596 = vmatprep.subr.bf16.mxu0 0
      %1597 = vmatpush1.bf16.msra.mxu0 %v1541
      %1598 = vmatprep.subr.bf16.mxu0 0
      %1599 = vmatpush1.bf16.msra.mxu0 %v1542
      %1600 = vmatprep.subr.bf16.mxu0 0
      %1601 = vmatpush1.bf16.msra.mxu0 %v1543
      %1602 = vmatprep.subr.bf16.mxu0 0
      %1603 = vmatpush1.bf16.msra.mxu0 %v1544
      %1604 = vmatprep.subr.bf16.mxu0 0
      %1605 = vmatpush1.bf16.msra.mxu0 %v1545
      %1606 = vmatprep.subr.bf16.mxu0 0
      %1607 = vmatpush1.bf16.msra.mxu0 %v1546
      %1608 = vmatprep.subr.bf16.mxu0 0
      %1609 = vmatpush1.bf16.msra.mxu0 %v1547
      %1610 = vmatprep.subr.bf16.mxu0 0
      %1611 = vmatpush1.bf16.msra.mxu0 %v1548
      %1612 = vmatprep.subr.bf16.mxu0 0
      %1613 = vmatpush1.bf16.msra.mxu0 %v1549
      %1614 = vmatprep.mubr.bf16.mxu0 %v1381
      %1615 = vmatmul.mubr.bf16.gmra.mrb[0].mxu0 %v1380
      %v1616 = vpop.f32.mrb[0].mxu0
      %v1617 = vadd.f32 %v1436, %v1616
      %v1618 = vpop.f32.mrb[0].mxu0
      %v1619 = vpop.f32.mrb[0].mxu0
      %v1620 = vpop.f32.mrb[0].mxu0
      %1621 = vdwg.mxu0
      %1622 = vmatprep.subr.bf16.mxu0 0
      %1623 = vmatpush1.bf16.msra.mxu0 %v1550
      %1624 = vmatprep.subr.bf16.mxu0 0
      %1625 = vmatpush1.bf16.msra.mxu0 %v1551
      %1626 = vmatprep.subr.bf16.mxu0 0
      %1627 = vmatpush1.bf16.msra.mxu0 %v1552
      %1628 = vmatprep.subr.bf16.mxu0 0
      %1629 = vmatpush1.bf16.msra.mxu0 %v1553
      %1630 = vmatprep.subr.bf16.mxu0 0
      %1631 = vmatpush1.bf16.msra.mxu0 %v1554
      %1632 = vmatprep.subr.bf16.mxu0 0
      %1633 = vmatpush1.bf16.msra.mxu0 %v1555
      %1634 = vmatprep.subr.bf16.mxu0 0
      %1635 = vmatpush1.bf16.msra.mxu0 %v1556
      %1636 = vmatprep.subr.bf16.mxu0 0
      %1637 = vmatpush1.bf16.msra.mxu0 %v1557
      %1638 = vmatprep.subr.bf16.mxu0 0
      %1639 = vmatpush1.bf16.msra.mxu0 0
      %1640 = vmatprep.subr.bf16.mxu0 0
      %1641 = vmatpush1.bf16.msra.mxu0 0
      %1642 = vmatprep.subr.bf16.mxu0 0
      %1643 = vmatpush1.bf16.msra.mxu0 0
      %1644 = vmatprep.subr.bf16.mxu0 0
      %1645 = vmatpush1.bf16.msra.mxu0 0
      %1646 = vmatprep.subr.bf16.mxu0 0
      %1647 = vmatpush1.bf16.msra.mxu0 0
      %1648 = vmatprep.subr.bf16.mxu0 0
      %1649 = vmatpush1.bf16.msra.mxu0 0
      %1650 = vmatprep.subr.bf16.mxu0 0
      %1651 = vmatpush1.bf16.msra.mxu0 0
      %1652 = vmatprep.subr.bf16.mxu0 0
      %1653 = vmatpush1.bf16.msra.mxu0 0
      %1654 = vmatprep.mubr.bf16.mxu0 0
      %1655 = vmatmul.mubr.bf16.gmra.mrb[0].mxu0 %v1382
      %v1656 = vpop.f32.mrb[0].mxu0
      %v1657 = vadd.f32 %v1617, %v1656
      %v1658 = vpop.f32.mrb[0].mxu0
      %v1659 = vpop.f32.mrb[0].mxu0
      %v1660 = vpop.f32.mrb[0].mxu0
      %1661 = vdwg.mxu0
      %v1662 = vmax.f32 %v1657, 0.0
      %1663 = vst [vmem:[%s359] sm:$0xff] %v1662
      %p1664 = scmp.lt.s32.totalorder %s21, 1
      %s1665 = scalar_select %p1664, %s21, 1
      %s1666 = smul.addr %s1665, 8
      %s1667 = scalar_lea.vmem %s10, %s1666
      // Predicated region
      $region61: #{_lambda_.1} parent=59 // pred_check
        %p1668 = pneg %p254
      $region62: #{_lambda_.1} parent=59 // pred_check_branch
        %1670 = sbr.rel (%p1668) target = $region64
      $region63: #{_lambda_.1} parent=59 // pred_region
        _
      $region64: #{_lambda_.1} parent=59 // pred_fallthru
        _
    $region60: #{_lambda_.1} parent=5 // pred_fallthru
      _
    %p1671 = scmp.le.s32.totalorder 2, %s16
    // Predicated region
    $region65: #{_lambda_.1} parent=5 // pred_check
      %p1672 = pneg %p1671
    $region66: #{_lambda_.1} parent=5 // pred_check_branch
      %1674 = sbr.rel (%p1672) target = $region68
    $region67: #{_lambda_.1} parent=5 // pred_region
      %s1675 = ssub.s32 %s16, 2
      // Predicated region
      $region69: #{_lambda_.1} parent=67 // pred_check
        %p1676 = pneg %p260
      $region70: #{_lambda_.1} parent=67 // pred_check_branch
        %1678 = sbr.rel (%p1676) target = $region72
      $region71: #{_lambda_.1} parent=67 // pred_region
        %p1679 = scmp.lt.s32.totalorder %s22, 1
        %s1680 = scalar_select %p1679, %s22, 1
        %s1681 = smul.addr %s1680, 8
        %s1682 = scalar_lea.vmem %s10, %s1681
      $region72: #{_lambda_.1} parent=67 // pred_fallthru
        _
    $region68: #{_lambda_.1} parent=5 // pred_fallthru
      _
  $region6: #{_lambda_.1} parent=0 // loop_footer
    %s20 = sadd.s32 1, %s16
  $region7: #{_lambda_.1} parent=0 // loop_footer_branch
    %15 = sbr.rel target = $region3
  $region8: #{_lambda_.1} parent=0 // loop_exit
    _

</llo_original>
